<compile_context>
chip_gen: v6e
topology: v6e:2x2x1
jax: 0.10.0
libtpu: 0.0.40
codegen_flags: <defaults>
</compile_context>

<pallas_src>
import functools
import math

import jax
import jax.numpy as jnp
from jax.experimental import pallas as pl
from jax.experimental.pallas import tpu as pltpu


# ----------------------------------------------------------------------------
# Row-tiled linear (bf16 MXU, f32 accumulate, fused bias + ReLU)
# ----------------------------------------------------------------------------
def _linear_kernel(a_ref, w_ref, bias_ref, o_ref, *, act):
    acc = jnp.dot(a_ref[...], w_ref[...], preferred_element_type=jnp.float32)
    acc = acc + bias_ref[...]
    if act == "relu":
        acc = jnp.maximum(acc, 0.0)
    o_ref[...] = acc.astype(o_ref.dtype)


def pallas_linear(a, w, b=None, act="none", tm=1024, out_dtype=jnp.float32):
    """a: (M, K), w: (K, N) [bf16 preferred], b: (N,) or (1,N) -> (M, N)."""
    M, K = a.shape
    N = w.shape[1]
    if b is None:
        b2 = jnp.zeros((1, N), jnp.float32)
    else:
        b2 = b.reshape(1, N).astype(jnp.float32)
    tm_eff = M if M <= tm else tm
    kernel = functools.partial(_linear_kernel, act=act)
    return pl.pallas_call(
        kernel,
        out_shape=jax.ShapeDtypeStruct((M, N), out_dtype),
        grid=(pl.cdiv(M, tm_eff),),
        in_specs=[
            pl.BlockSpec((tm_eff, K), lambda i: (i, 0)),
            pl.BlockSpec((K, N), lambda i: (0, 0)),
            pl.BlockSpec((1, N), lambda i: (0, 0)),
        ],
        out_specs=pl.BlockSpec((tm_eff, N), lambda i: (i, 0)),
        compiler_params=pltpu.CompilerParams(dimension_semantics=("parallel",)),
    )(a.astype(jnp.bfloat16), w.astype(jnp.bfloat16), b2)


# ----------------------------------------------------------------------------
# Backbone conv: 3x3, stride 2, pad 1.  Patches formed in VMEM from a 4-phase
# split of the padded input; per-tap (Ho*Wo, Cin) @ (Cin, Cout) MXU matmuls
# accumulate into a lane-dense (Ho*Wo, Cout) f32 accumulator.
# ----------------------------------------------------------------------------
def _conv3x3_s2_kernel(p00_ref, p01_ref, p10_ref, p11_ref, w_ref, bias_ref,
                       o_ref, *, Ho, Wo, Cin, Cout, act):
    phases = (p00_ref[0], p01_ref[0], p10_ref[0], p11_ref[0])   # (Ho+1, Wo+1, Cin)
    acc = jnp.zeros((Ho * Wo, Cout), jnp.float32) + bias_ref[...]
    t = 0
    for i in range(3):
        for j in range(3):
            ph = phases[(i % 2) * 2 + (j % 2)]
            patch = ph[i // 2:i // 2 + Ho, j // 2:j // 2 + Wo, :]   # (Ho, Wo, Cin)
            patch2d = patch.reshape(Ho * Wo, Cin)
            if Cin == 1:
                # degenerate contraction: a single broadcast FMA per tap.
                acc = acc + (patch2d.astype(jnp.float32)
                             * w_ref[t:t + 1, :].astype(jnp.float32))
            else:
                acc = acc + jnp.dot(patch2d, w_ref[t * Cin:(t + 1) * Cin, :],
                                    preferred_element_type=jnp.float32)
            t += 1
    if act == "relu":
        acc = jnp.maximum(acc, 0.0)
    o_ref[0] = acc.astype(o_ref.dtype)


def conv3x3_s2_nhwc(x, w2, b2, act="relu"):
    """x: (N,H,W,Cin) f32; w2: (9*Cin, Cout) bf16 (pre-packed); b2: (1, Cout)."""
    N, H, Wd, Cin = x.shape
    assert H % 2 == 0 and Wd % 2 == 0 and w2.shape[0] == 9 * Cin
    Ho, Wo = H // 2, Wd // 2
    Cout = w2.shape[-1]
    xp = jnp.pad(x, ((0, 0), (1, 1), (1, 1), (0, 0))).astype(jnp.bfloat16)
    # phases[(pi,pj)] = xp[:, pi::2, pj::2, :], each (N, Ho+1, Wo+1, Cin)
    phases = [xp[:, pi::2, pj::2, :] for pi in (0, 1) for pj in (0, 1)]
    kernel = functools.partial(_conv3x3_s2_kernel, Ho=Ho, Wo=Wo, Cin=Cin,
                               Cout=Cout, act=act)
    phase_spec = pl.BlockSpec((1, Ho + 1, Wo + 1, Cin), lambda n: (n, 0, 0, 0))
    out = pl.pallas_call(
        kernel,
        out_shape=jax.ShapeDtypeStruct((N, Ho * Wo, Cout), jnp.float32),
        grid=(N,),
        in_specs=[phase_spec, phase_spec, phase_spec, phase_spec,
                  pl.BlockSpec((9 * Cin, Cout), lambda n: (0, 0)),
                  pl.BlockSpec((1, Cout), lambda n: (0, 0))],
        out_specs=pl.BlockSpec((1, Ho * Wo, Cout), lambda n: (n, 0, 0)),
        compiler_params=pltpu.CompilerParams(dimension_semantics=("parallel",)),
    )(*phases, w2, b2)
    # TODO(synk): add a spatial row-tile grid axis for large images (v7x VMEM).
    return out.reshape(N, Ho, Wo, Cout)


def backbone(p, x_nchw):
    x = jnp.transpose(x_nchw, (0, 2, 3, 1))                       # NHWC
    x1 = conv3x3_s2_nhwc(x, p["conv1_w"], p["conv1_b"])           # 1/2
    x2 = conv3x3_s2_nhwc(x1, p["conv2_w"], p["conv2_b"])          # 1/4
    xc = conv3x3_s2_nhwc(x2, p["conv3_w"], p["conv3_b"])          # 1/8
    return {"feats_c": xc, "feats_x2": x2, "feats_x1": x1}


# ----------------------------------------------------------------------------
# Linear attention: kv / ksum computed once per batch block, query tiles
# streamed along an "arbitrary" L axis.
# ----------------------------------------------------------------------------
def _elu_plus_one(x):
    return jnp.where(x > 0, x + 1.0, jnp.exp(jnp.minimum(x, 0.0)))


def _linear_attn_kernel(q_ref, k_ref, v_ref, o_ref, kv_ref, ksum_ref):
    eps = 1e-6
    li = pl.program_id(1)

    @pl.when(li == 0)
    def _():
        k = k_ref[0].astype(jnp.float32)                         # (H, S, D)
        kf = _elu_plus_one(k)
        kv_ref[...] = jax.lax.dot_general(
            kf.astype(jnp.bfloat16), v_ref[0],
            (((1,), (1,)), ((0,), (0,))),
            preferred_element_type=jnp.float32)                  # (H, D, D)
        ksum_ref[...] = jnp.sum(kf, axis=1, keepdims=True)       # (H, 1, D)

    q = q_ref[0].astype(jnp.float32)                             # (H, tl, D)
    qf = _elu_plus_one(q)
    denom = jnp.sum(qf * ksum_ref[...], axis=-1, keepdims=True)  # (H, tl, 1)
    z = pl.reciprocal(denom + eps, approx=True)
    out = jax.lax.dot_general(qf.astype(jnp.bfloat16),
                              kv_ref[...].astype(jnp.bfloat16),
                              (((2,), (1,)), ((0,), (0,))),
                              preferred_element_type=jnp.float32) * z
    o_ref[0] = out.astype(o_ref.dtype)


def pallas_linear_attention(q, k, v, out_dtype=jnp.bfloat16):
    """q: (B, H, L, D), k/v: (B, H, S, D) -> (B, H, L, D)."""
    B, H, L, D = q.shape
    S = k.shape[2]
    tl = L if L <= 512 else 256
    nlt = pl.cdiv(L, tl)
    return pl.pallas_call(
        _linear_attn_kernel,
        out_shape=jax.ShapeDtypeStruct((B, H, L, D), out_dtype),
        grid=(B, nlt),
        in_specs=[pl.BlockSpec((1, H, tl, D), lambda bi, li: (bi, 0, li, 0)),
                  pl.BlockSpec((1, H, S, D), lambda bi, li: (bi, 0, 0, 0)),
                  pl.BlockSpec((1, H, S, D), lambda bi, li: (bi, 0, 0, 0))],
        out_specs=pl.BlockSpec((1, H, tl, D), lambda bi, li: (bi, 0, li, 0)),
        scratch_shapes=[pltpu.VMEM((H, D, D), jnp.float32),
                        pltpu.VMEM((H, 1, D), jnp.float32)],
        compiler_params=pltpu.CompilerParams(
            dimension_semantics=("parallel", "arbitrary")),
    )(q.astype(jnp.bfloat16), k.astype(jnp.bfloat16), v.astype(jnp.bfloat16))


# ----------------------------------------------------------------------------
# Fused encoder-layer epilogue: merge-proj + LN1 + MLP(+ReLU) + LN2 + residual
# (x rows and output are bf16; all math in f32 inside the kernel)
# ----------------------------------------------------------------------------
def _ln(v, g, b):
    mu = jnp.mean(v, axis=-1, keepdims=True)
    var = jnp.mean((v - mu) ** 2, axis=-1, keepdims=True)
    return (v - mu) * jax.lax.rsqrt(var + 1e-5) * g + b


def _encoder_ffn_kernel(x_ref, msg_ref, wm_ref, bm_ref, g1_ref, b1_ref,
                        w1_ref, bmlp1_ref, w2_ref, bmlp2_ref, g2_ref, b2_ref,
                        o_ref):
    x_bf = x_ref[...]                                               # (tm, C) bf16
    x = x_bf.astype(jnp.float32)
    C = x.shape[-1]
    m = jnp.dot(msg_ref[...], wm_ref[...],
                preferred_element_type=jnp.float32) + bm_ref[...]
    m = _ln(m, g1_ref[...], b1_ref[...])
    wm1 = w1_ref[...]                                               # (2C, 2C) bf16
    # concat([x, m]) @ w_mlp1  ==  x @ w_mlp1[:C] + m @ w_mlp1[C:]
    h = (jnp.dot(x_bf, wm1[:C, :], preferred_element_type=jnp.float32)
         + jnp.dot(m.astype(jnp.bfloat16), wm1[C:, :],
                   preferred_element_type=jnp.float32)
         + bmlp1_ref[...])
    h = jnp.maximum(h, 0.0)
    h = jnp.dot(h.astype(jnp.bfloat16), w2_ref[...],
                preferred_element_type=jnp.float32) + bmlp2_ref[...]
    h = _ln(h, g2_ref[...], b2_ref[...])
    o_ref[...] = (x + h).astype(o_ref.dtype)


def pallas_encoder_ffn(x_rows, msg_rows, p, tm=1024):
    M, C = x_rows.shape
    tm_eff = M if M <= tm else tm
    row_spec = pl.BlockSpec((tm_eff, C), lambda i: (i, 0))

    def par(shape):
        return pl.BlockSpec(shape, lambda i: (0, 0))

    return pl.pallas_call(
        _encoder_ffn_kernel,
        out_shape=jax.ShapeDtypeStruct((M, C), jnp.bfloat16),
        grid=(pl.cdiv(M, tm_eff),),
        in_specs=[row_spec, row_spec,
                  par((C, C)), par((1, C)), par((1, C)), par((1, C)),
                  par((2 * C, 2 * C)), par((1, 2 * C)),
                  par((2 * C, C)), par((1, C)), par((1, C)), par((1, C))],
        out_specs=row_spec,
        compiler_params=pltpu.CompilerParams(dimension_semantics=("parallel",)),
    )(x_rows.astype(jnp.bfloat16), msg_rows.astype(jnp.bfloat16),
      p["w_merge"], p["b_merge"], p["ln1_g"], p["ln1_b"],
      p["w_mlp1"], p["b_mlp1"], p["w_mlp2"], p["b_mlp2"],
      p["ln2_g"], p["ln2_b"])


def loftr_encoder_layer(p, x, source, nhead):
    bsz, L, C = x.shape
    S = source.shape[1]
    dh = C // nhead
    x_rows = x.reshape(bsz * L, C).astype(jnp.bfloat16)
    if x is source:   # self-attention: pre-fused (C, 3C) projection
        qkv = pallas_linear(x_rows, p["w_qkv"], out_dtype=jnp.bfloat16)
        q, k, v = qkv[:, :C], qkv[:, C:2 * C], qkv[:, 2 * C:]
    else:             # cross-attention: q from x, pre-fused (C, 2C) k/v
        src_rows = source.reshape(bsz * S, C).astype(jnp.bfloat16)
        q = pallas_linear(x_rows, p["wq"], out_dtype=jnp.bfloat16)
        kv = pallas_linear(src_rows, p["w_kv"], out_dtype=jnp.bfloat16)
        k, v = kv[:, :C], kv[:, C:]

    def heads(t, n):
        return t.reshape(bsz, n, nhead, dh).transpose(0, 2, 1, 3)

    msg = pallas_linear_attention(heads(q, L), heads(k, S), heads(v, S))
    msg = msg.transpose(0, 2, 1, 3).reshape(bsz * L, C)
    out = pallas_encoder_ffn(x_rows, msg, p)
    return out.reshape(bsz, L, C)


def local_feature_transformer(layer_params, layer_names, feat0, feat1, nhead):
    for p, name in zip(layer_params, layer_names):
        if name == "self":
            feat0 = loftr_encoder_layer(p, feat0, feat0, nhead)
            feat1 = loftr_encoder_layer(p, feat1, feat1, nhead)
        else:  # cross (sequential: feat1 sees updated feat0 — matches PyTorch)
            feat0 = loftr_encoder_layer(p, feat0, feat1, nhead)
            feat1 = loftr_encoder_layer(p, feat1, feat0, nhead)
    return feat0, feat1


# ----------------------------------------------------------------------------
# Coarse matching: row-tiled two-pass dual-softmax (exact), fused argmaxes.
# ----------------------------------------------------------------------------
def _ds_colstats_kernel(f0_ref, f1_ref, cmax_ref, csum_ref, *, scale, tl, n_rows):
    li = pl.program_id(1)

    @pl.when(li == 0)
    def _():
        cmax_ref[...] = jnp.full_like(cmax_ref, -jnp.inf)
        csum_ref[...] = jnp.zeros_like(csum_ref)

    sim = jax.lax.dot_general(f0_ref[0], f1_ref[0], (((1,), (1,)), ((), ())),
                              preferred_element_type=jnp.float32) * scale  # (tl,S)
    row_g = jax.lax.broadcasted_iota(jnp.int32, sim.shape, 0) + li * tl
    sim = jnp.where(row_g < n_rows, sim, -jnp.inf)
    tcm = jnp.max(sim, axis=0, keepdims=True)                              # (1,S)
    run = cmax_ref[0]
    new = jnp.maximum(run, tcm)
    csum_ref[0] = (csum_ref[0] * jnp.exp(run - new)
                   + jnp.sum(jnp.exp(sim - new), axis=0, keepdims=True))
    cmax_ref[0] = new


def _ds_conf_kernel(f0_ref, f1_ref, cmax_ref, csum_ref,
                    conf_ref, rowpack_ref, iback_ref, colbest_ref,
                    *, scale, tl, n_rows, n_cols):
    li = pl.program_id(1)

    @pl.when(li == 0)
    def _():
        colbest_ref[...] = jnp.full_like(colbest_ref, -1.0)
        iback_ref[...] = jnp.zeros_like(iback_ref)

    sim = jax.lax.dot_general(f0_ref[0], f1_ref[0], (((1,), (1,)), ((), ())),
                              preferred_element_type=jnp.float32) * scale  # (tl,S)
    row_g = jax.lax.broadcasted_iota(jnp.int32, sim.shape, 0) + li * tl
    valid = row_g < n_rows
    sim = jnp.where(valid, sim, -jnp.inf)

    rmax = jnp.max(sim, axis=1, keepdims=True)                             # (tl,1)
    rsum = jnp.sum(jnp.exp(sim - rmax), axis=1, keepdims=True)             # (tl,1)
    cmax = cmax_ref[0]                                                      # (1,S)
    csum = csum_ref[0]
    # exp(2s - rmax - cmax) == exp(s-rmax)*exp(s-cmax): single exp pass;
    # exact f32 divides for the normalizers (correctness feedback).
    conf = jnp.exp(2.0 * sim - rmax - cmax) * ((1.0 / rsum) * (1.0 / csum))
    conf = jnp.where(valid, conf, 0.0)
    conf_ref[0] = conf.astype(conf_ref.dtype)

    # row argmax + row max, packed lane-dense (lane0=mconf, lane1=jid)
    col_idx = jax.lax.broadcasted_iota(jnp.int32, conf.shape, 1)
    rbest = jnp.max(conf, axis=1, keepdims=True)                           # (tl,1)
    jid = jnp.min(jnp.where(conf == rbest, col_idx, n_cols),
                  axis=1, keepdims=True)                                   # (tl,1)
    lane = jax.lax.broadcasted_iota(jnp.int32, (conf.shape[0], 128), 1)
    rowpack_ref[0] = jnp.where(lane == 0, rbest,
                               jnp.where(lane == 1, jid.astype(jnp.float32), 0.0))

    # running column-wise argmax across row tiles
    cbest_tile = jnp.max(conf, axis=0, keepdims=True)                      # (1,S)
    arg_tile = jnp.min(jnp.where(conf == cbest_tile, row_g, n_rows),
                       axis=0, keepdims=True)
    better = cbest_tile > colbest_ref[...]
    iback_ref[0] = jnp.where(better, arg_tile, iback_ref[0])
    colbest_ref[...] = jnp.maximum(colbest_ref[...], cbest_tile)


def pallas_dual_softmax_match(feat0, feat1, temperature, conf_dtype=jnp.float32):
    # conf_dtype=jnp.bfloat16 halves the dominant HBM writeback (recommended
    # on v5e); kept f32 by default to match the reference conf_matrix dtype.
    b, L, C = feat0.shape
    S = feat1.shape[1]
    scale = 1.0 / (temperature * C)
    tl = L if L <= 256 else 128
    nlt = pl.cdiv(L, tl)
    f0 = feat0.astype(jnp.bfloat16)
    f1 = feat1.astype(jnp.bfloat16)

    cmax, csum = pl.pallas_call(
        functools.partial(_ds_colstats_kernel, scale=scale, tl=tl, n_rows=L),
        out_shape=(jax.ShapeDtypeStruct((b, 1, S), jnp.float32),
                   jax.ShapeDtypeStruct((b, 1, S), jnp.float32)),
        grid=(b, nlt),
        in_specs=[pl.BlockSpec((1, tl, C), lambda bi, li: (bi, li, 0)),
                  pl.BlockSpec((1, S, C), lambda bi, li: (bi, 0, 0))],
        out_specs=(pl.BlockSpec((1, 1, S), lambda bi, li: (bi, 0, 0)),
                   pl.BlockSpec((1, 1, S), lambda bi, li: (bi, 0, 0))),
        compiler_params=pltpu.CompilerParams(
            dimension_semantics=("parallel", "arbitrary")),
    )(f0, f1)

    conf, rowpack, iback = pl.pallas_call(
        functools.partial(_ds_conf_kernel, scale=scale, tl=tl,
                          n_rows=L, n_cols=S),
        out_shape=(jax.ShapeDtypeStruct((b, L, S), conf_dtype),
                   jax.ShapeDtypeStruct((b, L, 128), jnp.float32),
                   jax.ShapeDtypeStruct((b, 1, S), jnp.int32)),
        grid=(b, nlt),
        in_specs=[pl.BlockSpec((1, tl, C), lambda bi, li: (bi, li, 0)),
                  pl.BlockSpec((1, S, C), lambda bi, li: (bi, 0, 0)),
                  pl.BlockSpec((1, 1, S), lambda bi, li: (bi, 0, 0)),
                  pl.BlockSpec((1, 1, S), lambda bi, li: (bi, 0, 0))],
        out_specs=(pl.BlockSpec((1, tl, S), lambda bi, li: (bi, li, 0)),
                   pl.BlockSpec((1, tl, 128), lambda bi, li: (bi, li, 0)),
                   pl.BlockSpec((1, 1, S), lambda bi, li: (bi, 0, 0))),
        scratch_shapes=[pltpu.VMEM((1, S), jnp.float32)],
        compiler_params=pltpu.CompilerParams(
            dimension_semantics=("parallel", "arbitrary")),
    )(f0, f1, cmax, csum)

    mconf = rowpack[:, :, 0]
    jid = rowpack[:, :, 1].astype(jnp.int32)
    return conf, jid, mconf, iback[:, 0, :]


def coarse_matching(feat0, feat1, thr, temperature):
    b, L, C = feat0.shape
    conf, j_ids, mconf, i_back = pallas_dual_softmax_match(feat0, feat1, temperature)
    # Static-shape analog of match selection: one candidate per row + validity mask.
    mutual = jnp.take_along_axis(i_back, j_ids, axis=1) == jnp.arange(L)[None, :]
    mask = mutual & (mconf > thr)
    return conf, j_ids, mconf, mask


# ----------------------------------------------------------------------------
# Fused FPN decode: both 1x1 convs + 2x nearest upsamples + adds + ReLUs in one
# kernel.  Phase-packed channel layouts turn the upsamples into matmuls with
# kron-structured (block-diag / tiled / expansion) weights; no full-resolution
# intermediates are materialized in HBM.
# ----------------------------------------------------------------------------
def _fpn_fuse_kernel(fc_ref, x2_ref, x1_ref, wc_ref, wx2_ref, bias2_ref,
                     wf2e_ref, wx1_ref, biasf_ref, f2_ref, ff_ref):
    c1 = jnp.dot(fc_ref[0], wc_ref[...], preferred_element_type=jnp.float32)
    x2o = jnp.dot(x2_ref[0], wx2_ref[...], preferred_element_type=jnp.float32)
    f2 = jnp.maximum(c1 + x2o + bias2_ref[...], 0.0)                  # (rows, 4*16)
    f2_ref[0] = f2.astype(f2_ref.dtype)
    ffb = jnp.dot(f2.astype(jnp.bfloat16), wf2e_ref[...],
                  preferred_element_type=jnp.float32)                 # (rows, 16*df)
    x1o = jnp.dot(x1_ref[0], wx1_ref[...], preferred_element_type=jnp.float32)
    ff = jnp.maximum(ffb + x1o + biasf_ref[...], 0.0)
    ff_ref[0] = ff.astype(ff_ref.dtype)


def fine_preprocess_fpn(p, feats_c, feats_x2, feats_x1):
    N, hc, wc, Cc = feats_c.shape
    c2 = feats_x2.shape[-1]
    c1 = feats_x1.shape[-1]
    hw = hc * wc
    n2 = p["wx2_bd"].shape[1]       # 4*c2
    nf = p["wx1_bd"].shape[1]       # 16*df
    df = nf // 16

    fc = feats_c.reshape(N, hw, Cc).astype(jnp.bfloat16)
    x2p = (feats_x2.reshape(N, hc, 2, wc, 2, c2).transpose(0, 1, 3, 2, 4, 5)
           .reshape(N, hw, 4 * c2).astype(jnp.bfloat16))
    x1p = (feats_x1.reshape(N, hc, 4, wc, 4, c1).transpose(0, 1, 3, 2, 4, 5)
           .reshape(N, hw, 16 * c1).astype(jnp.bfloat16))

    rows_t = hw if hw <= 1024 else 512
    nrt = pl.cdiv(hw, rows_t)

    def row_spec(ch):
        return pl.BlockSpec((1, rows_t, ch), lambda n, r: (n, r, 0))

    def par(shape):
        return pl.BlockSpec(shape, lambda n, r: (0, 0))

    f2pack, ffpack = pl.pallas_call(
        _fpn_fuse_kernel,
        out_shape=(jax.ShapeDtypeStruct((N, hw, 4 * c2), jnp.float32),
                   jax.ShapeDtypeStruct((N, hw, nf), jnp.float32)),
        grid=(N, nrt),
        in_specs=[row_spec(Cc), row_spec(4 * c2), row_spec(16 * c1),
                  par(p["wc_t"].shape), par(p["wx2_bd"].shape),
                  par(p["bias2"].shape), par(p["wf2e"].shape),
                  par(p["wx1_bd"].shape), par(p["biasf"].shape)],
        out_specs=(row_spec(4 * c2), row_spec(nf)),
        compiler_params=pltpu.CompilerParams(
            dimension_semantics=("parallel", "parallel")),
    )(fc, x2p, x1p, p["wc_t"], p["wx2_bd"], p["bias2"],
      p["wf2e"], p["wx1_bd"], p["biasf"])

    f2_map = (f2pack.reshape(N, hc, wc, 2, 2, c2).transpose(0, 1, 3, 2, 4, 5)
              .reshape(N, 2 * hc, 2 * wc, c2))
    feat_f = (ffpack.reshape(N, hc, wc, 4, 4, df).transpose(0, 1, 3, 2, 4, 5)
              .reshape(N, 4 * hc, 4 * wc, df))
    return f2_map, feat_f


# ----------------------------------------------------------------------------
# Fine matching: batched scalar-prefetch window gather (G matches per step,
# double-buffered DMAs straight from the unpadded feature map) fused with a
# batched soft-argmax expectation.  Lane-dense (M,128) output.
# ----------------------------------------------------------------------------
def _fine_gather_match_kernel(b_ref, r0_ref, c0_ref, r1_ref, c1_ref,
                              featf_ref, o_ref, w0buf, w1buf, sems,
                              *, win, cf, g, inv_sqrt_c, nimg):
    s = pl.program_id(0)
    nsteps = pl.num_programs(0)

    def start(step, slot):
        for gg in range(g):
            m = step * g + gg
            b0 = b_ref[m]
            pltpu.make_async_copy(
                featf_ref.at[b0, pl.ds(r0_ref[m], win), pl.ds(c0_ref[m], win), :],
                w0buf.at[slot, gg], sems.at[slot, 0, gg]).start()
            pltpu.make_async_copy(
                featf_ref.at[b0 + nimg, pl.ds(r1_ref[m], win), pl.ds(c1_ref[m], win), :],
                w1buf.at[slot, gg], sems.at[slot, 1, gg]).start()

    def wait(slot):
        for gg in range(g):
            pltpu.make_async_copy(
                featf_ref.at[0, pl.ds(0, win), pl.ds(0, win), :],
                w0buf.at[slot, gg], sems.at[slot, 0, gg]).wait()
            pltpu.make_async_copy(
                featf_ref.at[0, pl.ds(0, win), pl.ds(0, win), :],
                w1buf.at[slot, gg], sems.at[slot, 1, gg]).wait()

    slot = s % 2

    @pl.when(s == 0)
    def _():
        start(0, 0)

    wait(slot)

    @pl.when(s + 1 < nsteps)
    def _():
        start(s + 1, 1 - slot)

    f0 = w0buf[slot]                                     # (G, win, win, Cf) f32
    f1 = w1buf[slot]
    center = f0[:, win // 2, win // 2, :]                # (G, Cf)
    f1m = f1.reshape(g, win * win, cf)
    scores = jnp.sum(f1m * center[:, None, :], axis=-1) * inv_sqrt_c   # (G, ww)
    smax = jnp.max(scores, axis=-1, keepdims=True)
    e = jnp.exp(scores - smax)
    heat = e / jnp.sum(e, axis=-1, keepdims=True)
    half = win // 2
    denom = float(max(half, 1))
    ww = win * win
    gx = ((jax.lax.broadcasted_iota(jnp.int32, (1, ww), 1) % win
           ).astype(jnp.float32) - half) / denom
    gy = ((jax.lax.broadcasted_iota(jnp.int32, (1, ww), 1) // win
           ).astype(jnp.float32) - half) / denom
    cx = jnp.sum(heat * gx, axis=-1, keepdims=True)                    # (G, 1)
    cy = jnp.sum(heat * gy, axis=-1, keepdims=True)
    lane = jax.lax.broadcasted_iota(jnp.int32, (g, 128), 1)
    o_ref[...] = jnp.where(lane == 0, cx, jnp.where(lane == 1, cy, 0.0))


def pallas_fine_gather_match(feat_f, b_ids, i_ids, j_ids, hc, wc, win, nimg):
    N, Hf, Wf, Cf = feat_f.shape
    scale = Hf // hc
    M = b_ids.shape[0]
    G = M
    for cand in (64, 32, 16, 8, 4, 2):
        if M % cand == 0 and M // cand >= 2:
            G = cand
            break
    hi, wi = i_ids // wc, i_ids % wc
    hj, wj = j_ids // wc, j_ids % wc
    # clamp instead of padding the whole feature map (no-op when scale >= win)
    r0 = jnp.clip(hi * scale + scale // 2 - win // 2, 0, Hf - win).astype(jnp.int32)
    c0 = jnp.clip(wi * scale + scale // 2 - win // 2, 0, Wf - win).astype(jnp.int32)
    r1 = jnp.clip(hj * scale + scale // 2 - win // 2, 0, Hf - win).astype(jnp.int32)
    c1 = jnp.clip(wj * scale + scale // 2 - win // 2, 0, Wf - win).astype(jnp.int32)
    kernel = functools.partial(_fine_gather_match_kernel, win=win, cf=Cf, g=G,
                               inv_sqrt_c=1.0 / math.sqrt(Cf), nimg=nimg)
    out = pl.pallas_call(
        kernel,
        out_shape=jax.ShapeDtypeStruct((M, 128), jnp.float32),
        grid_spec=pltpu.PrefetchScalarGridSpec(
            num_scalar_prefetch=5,
            grid=(M // G,),
            in_specs=[pl.BlockSpec(memory_space=pl.ANY)],
            out_specs=pl.BlockSpec((G, 128), lambda s, *_: (s, 0)),
            scratch_shapes=[pltpu.VMEM((2, G, win, win, Cf), jnp.float32),
                            pltpu.VMEM((2, G, win, win, Cf), jnp.float32),
                            pltpu.SemaphoreType.DMA((2, 2, G))]),
        compiler_params=pltpu.CompilerParams(dimension_semantics=("arbitrary",)),
    )(b_ids.astype(jnp.int32), r0, c0, r1, c1, feat_f)
    return out[:, :2]                                                # (M, 2)


# ----------------------------------------------------------------------------
# Full LoFTR forward (synthetic weights)
# ----------------------------------------------------------------------------
def loftr_forward(params, data, config, return_cnn_features=True):
    b = data["image0"].shape[0]
    data.update({"bs": b,
                 "hw0_i": tuple(data["image0"].shape[2:]),
                 "hw1_i": tuple(data["image1"].shape[2:])})
    assert data["hw0_i"] == data["hw1_i"]
    images = jnp.concatenate([data["image0"], data["image1"]], axis=0)   # (2b,1,H,W)
    ret = backbone(params["backbone"], images)
    feats_c = ret["feats_c"]
    data["feats_x2"], data["feats_x1"] = ret["feats_x2"], ret["feats_x1"]
    feat_c0, feat_c1 = feats_c[:b], feats_c[b:]

    def to_bv(nhwc):  # (2b,H,W,C) -> (b, 2, C, H, W)
        nchw = jnp.transpose(nhwc, (0, 3, 1, 2))
        return nchw.reshape((b, 2) + nchw.shape[1:])

    cnn_features = [to_bv(feats_c), to_bv(ret["feats_x2"]), to_bv(ret["feats_x1"])]

    mul = config["resolution"][0] // config["resolution"][1]
    hc, wc = feat_c0.shape[1], feat_c0.shape[2]
    data.update({"hw0_c": (hc, wc), "hw1_c": (hc, wc),
                 "hw0_f": [hc * mul, wc * mul], "hw1_f": [hc * mul, wc * mul]})

    C = feat_c0.shape[-1]
    L = hc * wc
    f0 = feat_c0.reshape(b, L, C)
    f1 = feat_c1.reshape(b, L, C)
    f0, f1 = local_feature_transformer(params["loftr_coarse"], config["layer_names"],
                                       f0, f1, config["nhead"])

    def flat_to_nchw(f):
        return jnp.transpose(f.reshape(b, hc, wc, C), (0, 3, 1, 2)).astype(jnp.float32)

    coarse_features = jnp.stack([flat_to_nchw(f0), flat_to_nchw(f1)], axis=1)

    if config["replace_nan"]:
        f0, f1 = jnp.nan_to_num(f0), jnp.nan_to_num(f1)

    conf, j_ids_2d, mconf, match_mask = coarse_matching(
        f0, f1, config["match_coarse"]["thr"], config["match_coarse"]["temperature"])
    b_ids = jnp.repeat(jnp.arange(b), L)
    i_ids = jnp.tile(jnp.arange(L), b)
    j_ids = j_ids_2d.reshape(-1)
    data.update({"conf_matrix": conf, "b_ids": b_ids, "i_ids": i_ids, "j_ids": j_ids,
                 "mconf": mconf.reshape(-1), "match_mask": match_mask.reshape(-1)})

    f0 = f0 / (C ** 0.5)
    f1 = f1 / (C ** 0.5)
    # TODO(synk): real FinePreprocess also folds these normalized coarse-transformer
    # features into each fine window (cat_c_feat path); FPN-only windows here.
    Wwin = config["fine_window_size"]
    f2_map, feat_f = fine_preprocess_fpn(params["fine_preprocess"], feats_c,
                                         ret["feats_x2"], ret["feats_x1"])
    data["fpn_feature"] = [to_bv(f2_map), to_bv(feat_f)]

    if config["replace_nan"]:
        feat_f = jnp.nan_to_num(feat_f)

    expec_f = pallas_fine_gather_match(feat_f, b_ids, i_ids, j_ids, hc, wc, Wwin,
                                       nimg=b)
    data["expec_f"] = expec_f

    out_lists = [coarse_features, cnn_features if return_cnn_features else None]
    return out_lists, data


# ----------------------------------------------------------------------------
# Deterministic parameter init (synthetic weights, pre-packed / pre-cast once)
# ----------------------------------------------------------------------------
def _rand(key, shape, scale=0.05):
    return scale * jax.random.normal(key, shape, jnp.float32)


def init_encoder_layer(key, d):
    ks = jax.random.split(key, 6)
    wq = _rand(ks[0], (d, d))
    wk = _rand(ks[1], (d, d))
    wv = _rand(ks[2], (d, d))
    return {
        "wq": wq.astype(jnp.bfloat16),
        "w_qkv": jnp.concatenate([wq, wk, wv], axis=1).astype(jnp.bfloat16),
        "w_kv": jnp.concatenate([wk, wv], axis=1).astype(jnp.bfloat16),
        "w_merge": _rand(ks[3], (d, d)).astype(jnp.bfloat16),
        "b_merge": jnp.zeros((1, d), jnp.float32),
        "ln1_g": jnp.ones((1, d), jnp.float32), "ln1_b": jnp.zeros((1, d), jnp.float32),
        "w_mlp1": _rand(ks[4], (2 * d, 2 * d)).astype(jnp.bfloat16),
        "b_mlp1": jnp.zeros((1, 2 * d), jnp.float32),
        "w_mlp2": _rand(ks[5], (2 * d, d)).astype(jnp.bfloat16),
        "b_mlp2": jnp.zeros((1, d), jnp.float32),
        "ln2_g": jnp.ones((1, d), jnp.float32), "ln2_b": jnp.zeros((1, d), jnp.float32),
    }


def _conv_params(key, cin, cout):
    w = _rand(key, (3, 3, cin, cout))
    return (w.reshape(9 * cin, cout).astype(jnp.bfloat16),
            jnp.zeros((1, cout), jnp.float32))


def init_fine_preprocess(keys, d, df):
    w_c = _rand(keys[0], (d, 16)); b_c = jnp.zeros((16,), jnp.float32)
    w_x2 = _rand(keys[1], (16, 16)); b_x2 = jnp.zeros((16,), jnp.float32)
    w_f2 = _rand(keys[2], (16, df)); b_f2 = jnp.zeros((df,), jnp.float32)
    w_x1 = _rand(keys[3], (8, df)); b_x1 = jnp.zeros((df,), jnp.float32)
    # phase p = (di,ei,dj,ej) packed as ri*4+rj with ri=2di+ei, rj=2dj+ej;
    # it pulls from x2-level phase q = 2di+dj.
    pidx = jnp.arange(16)
    qof = 2 * (pidx // 8) + (pidx // 2) % 2
    sel = (jnp.arange(4)[:, None] == qof[None, :]).astype(jnp.float32)     # (4,16)
    return {
        "wc_t": jnp.tile(w_c, (1, 4)).astype(jnp.bfloat16),                # (d, 64)
        "wx2_bd": jnp.kron(jnp.eye(4, dtype=jnp.float32), w_x2).astype(jnp.bfloat16),
        "bias2": jnp.tile(b_c + b_x2, (4,)).reshape(1, 64).astype(jnp.float32),
        "wf2e": jnp.kron(sel, w_f2).astype(jnp.bfloat16),                  # (64, 16*df)
        "wx1_bd": jnp.kron(jnp.eye(16, dtype=jnp.float32), w_x1).astype(jnp.bfloat16),
        "biasf": jnp.tile(b_f2 + b_x1, (16,)).reshape(1, 16 * df).astype(jnp.float32),
    }


def init_params(key, config):
    d = config["d_model"]
    df = config["d_model_f"]
    ks = jax.random.split(key, 12)
    c1w, c1b = _conv_params(ks[0], 1, 8)
    c2w, c2b = _conv_params(ks[1], 8, 16)
    c3w, c3b = _conv_params(ks[2], 16, d)
    backbone_p = {"conv1_w": c1w, "conv1_b": c1b,
                  "conv2_w": c2w, "conv2_b": c2b,
                  "conv3_w": c3w, "conv3_b": c3b}
    loftr_coarse = [init_encoder_layer(ks[3 + i], d)
                    for i in range(len(config["layer_names"]))]
    fine_p = init_fine_preprocess(ks[8:12], d, df)
    return {"backbone": backbone_p, "loftr_coarse": loftr_coarse,
            "fine_preprocess": fine_p}


# ----------------------------------------------------------------------------
if __name__ == "__main__":
    config = {
        "resolution": (8, 2),           # coarse stride 8, fine stride 2 -> mul = 4
        "fine_window_size": 3,
        "replace_nan": True,
        "match_coarse": {"thr": 0.2, "temperature": 0.1},
        "d_model": 32,
        "d_model_f": 8,
        "nhead": 4,
        "layer_names": ["self", "cross"],
    }

    key = jax.random.PRNGKey(0)
    k0, k1 = jax.random.split(key)
    b, H, W_img = 2, 32, 32
    image0 = jax.random.normal(k0, (b, 1, H, W_img), jnp.float32)
    image1 = jax.random.normal(k1, (b, 1, H, W_img), jnp.float32)

    params = init_params(jax.random.PRNGKey(42), config)
    data = {"image0": image0, "image1": image1}

    out_lists, data = loftr_forward(params, data, config, return_cnn_features=True)
    jax.block_until_ready((out_lists, data["expec_f"], data["conf_matrix"]))
    print("KERNEL_OK")
</pallas_src>

<mosaic_0001>
module attributes {stable_mosaic.version = 11 : i64} {
  func.func @_conv3x3_s2_kernel(%arg0: i32, %arg1: memref<1x17x17x1xbf16, #tpu.memory_space<vmem>>, %arg2: memref<1x17x17x1xbf16, #tpu.memory_space<vmem>>, %arg3: memref<1x17x17x1xbf16, #tpu.memory_space<vmem>>, %arg4: memref<1x17x17x1xbf16, #tpu.memory_space<vmem>>, %arg5: memref<9x8xbf16, #tpu.memory_space<vmem>>, %arg6: memref<1x8xf32, #tpu.memory_space<vmem>>, %arg7: memref<1x256x8xf32, #tpu.memory_space<vmem>>) attributes {dimension_semantics = [#tpu.dimension_semantics<parallel>], iteration_bounds = array<i64: 4>, scalar_prefetch = 0 : i64, scratch_operands = 0 : i64, tpu.core_type = #tpu.core_type<tc>, window_params = [{transform_indices = @transform_0, window_bounds = array<i64: 1, 17, 17, 1>}, {transform_indices = @transform_1, window_bounds = array<i64: 1, 17, 17, 1>}, {transform_indices = @transform_2, window_bounds = array<i64: 1, 17, 17, 1>}, {transform_indices = @transform_3, window_bounds = array<i64: 1, 17, 17, 1>}, {pipeline_mode = #tpu.pipeline_mode<synchronous>, transform_indices = @transform_4, window_bounds = array<i64: 9, 8>}, {pipeline_mode = #tpu.pipeline_mode<synchronous>, transform_indices = @transform_5, window_bounds = array<i64: 1, 8>}, {transform_indices = @transform_6, window_bounds = array<i64: 1, 256, 8>}]} {
    %c0 = arith.constant 0 : index
    %c0_0 = arith.constant 0 : index
    %c0_1 = arith.constant 0 : index
    %c0_2 = arith.constant 0 : index
    %0 = vector.load %arg1[%c0, %c0_0, %c0_1, %c0_2] : memref<1x17x17x1xbf16, #tpu.memory_space<vmem>>, vector<1x17x17x1xbf16>
    %1 = vector.shape_cast %0 : vector<1x17x17x1xbf16> to vector<17x17x1xbf16>
    %c0_3 = arith.constant 0 : index
    %c0_4 = arith.constant 0 : index
    %c0_5 = arith.constant 0 : index
    %c0_6 = arith.constant 0 : index
    %2 = vector.load %arg2[%c0_3, %c0_4, %c0_5, %c0_6] : memref<1x17x17x1xbf16, #tpu.memory_space<vmem>>, vector<1x17x17x1xbf16>
    %3 = vector.shape_cast %2 : vector<1x17x17x1xbf16> to vector<17x17x1xbf16>
    %c0_7 = arith.constant 0 : index
    %c0_8 = arith.constant 0 : index
    %c0_9 = arith.constant 0 : index
    %c0_10 = arith.constant 0 : index
    %4 = vector.load %arg3[%c0_7, %c0_8, %c0_9, %c0_10] : memref<1x17x17x1xbf16, #tpu.memory_space<vmem>>, vector<1x17x17x1xbf16>
    %5 = vector.shape_cast %4 : vector<1x17x17x1xbf16> to vector<17x17x1xbf16>
    %c0_11 = arith.constant 0 : index
    %c0_12 = arith.constant 0 : index
    %c0_13 = arith.constant 0 : index
    %c0_14 = arith.constant 0 : index
    %6 = vector.load %arg4[%c0_11, %c0_12, %c0_13, %c0_14] : memref<1x17x17x1xbf16, #tpu.memory_space<vmem>>, vector<1x17x17x1xbf16>
    %7 = vector.shape_cast %6 : vector<1x17x17x1xbf16> to vector<17x17x1xbf16>
    %cst = arith.constant 0.000000e+00 : f32
    %8 = vector.broadcast %cst : f32 to vector<256x8xf32>
    %c0_15 = arith.constant 0 : index
    %c0_16 = arith.constant 0 : index
    %9 = vector.load %arg6[%c0_15, %c0_16] : memref<1x8xf32, #tpu.memory_space<vmem>>, vector<1x8xf32>
    %10 = vector.broadcast %9 : vector<1x8xf32> to vector<256x8xf32>
    %11 = arith.addf %8, %10 : vector<256x8xf32>
    %12 = vector.extract_strided_slice %1 {offsets = [0, 0, 0], sizes = [16, 16, 1], strides = [1, 1, 1]} : vector<17x17x1xbf16> to vector<16x16x1xbf16>
    %13 = vector.shape_cast %12 : vector<16x16x1xbf16> to vector<256x1xbf16>
    %14 = arith.extf %13 : vector<256x1xbf16> to vector<256x1xf32>
    %c0_17 = arith.constant 0 : index
    %c0_18 = arith.constant 0 : index
    %15 = vector.load %arg5[%c0_17, %c0_18] : memref<9x8xbf16, #tpu.memory_space<vmem>>, vector<1x8xbf16>
    %16 = arith.extf %15 : vector<1x8xbf16> to vector<1x8xf32>
    %17 = vector.broadcast %14 : vector<256x1xf32> to vector<256x8xf32>
    %18 = vector.broadcast %16 : vector<1x8xf32> to vector<256x8xf32>
    %19 = arith.mulf %17, %18 : vector<256x8xf32>
    %20 = arith.addf %11, %19 : vector<256x8xf32>
    %21 = vector.extract_strided_slice %3 {offsets = [0, 0, 0], sizes = [16, 16, 1], strides = [1, 1, 1]} : vector<17x17x1xbf16> to vector<16x16x1xbf16>
    %22 = vector.shape_cast %21 : vector<16x16x1xbf16> to vector<256x1xbf16>
    %23 = arith.extf %22 : vector<256x1xbf16> to vector<256x1xf32>
    %c1 = arith.constant 1 : index
    %c0_19 = arith.constant 0 : index
    %24 = vector.load %arg5[%c1, %c0_19] : memref<9x8xbf16, #tpu.memory_space<vmem>>, vector<1x8xbf16>
    %25 = arith.extf %24 : vector<1x8xbf16> to vector<1x8xf32>
    %26 = vector.broadcast %23 : vector<256x1xf32> to vector<256x8xf32>
    %27 = vector.broadcast %25 : vector<1x8xf32> to vector<256x8xf32>
    %28 = arith.mulf %26, %27 : vector<256x8xf32>
    %29 = arith.addf %20, %28 : vector<256x8xf32>
    %30 = vector.extract_strided_slice %1 {offsets = [0, 1, 0], sizes = [16, 16, 1], strides = [1, 1, 1]} : vector<17x17x1xbf16> to vector<16x16x1xbf16>
    %31 = vector.shape_cast %30 : vector<16x16x1xbf16> to vector<256x1xbf16>
    %32 = arith.extf %31 : vector<256x1xbf16> to vector<256x1xf32>
    %c2 = arith.constant 2 : index
    %c0_20 = arith.constant 0 : index
    %33 = vector.load %arg5[%c2, %c0_20] : memref<9x8xbf16, #tpu.memory_space<vmem>>, vector<1x8xbf16>
    %34 = arith.extf %33 : vector<1x8xbf16> to vector<1x8xf32>
    %35 = vector.broadcast %32 : vector<256x1xf32> to vector<256x8xf32>
    %36 = vector.broadcast %34 : vector<1x8xf32> to vector<256x8xf32>
    %37 = arith.mulf %35, %36 : vector<256x8xf32>
    %38 = arith.addf %29, %37 : vector<256x8xf32>
    %39 = vector.extract_strided_slice %5 {offsets = [0, 0, 0], sizes = [16, 16, 1], strides = [1, 1, 1]} : vector<17x17x1xbf16> to vector<16x16x1xbf16>
    %40 = vector.shape_cast %39 : vector<16x16x1xbf16> to vector<256x1xbf16>
    %41 = arith.extf %40 : vector<256x1xbf16> to vector<256x1xf32>
    %c3 = arith.constant 3 : index
    %c0_21 = arith.constant 0 : index
    %42 = vector.load %arg5[%c3, %c0_21] : memref<9x8xbf16, #tpu.memory_space<vmem>>, vector<1x8xbf16>
    %43 = arith.extf %42 : vector<1x8xbf16> to vector<1x8xf32>
    %44 = vector.broadcast %41 : vector<256x1xf32> to vector<256x8xf32>
    %45 = vector.broadcast %43 : vector<1x8xf32> to vector<256x8xf32>
    %46 = arith.mulf %44, %45 : vector<256x8xf32>
    %47 = arith.addf %38, %46 : vector<256x8xf32>
    %48 = vector.extract_strided_slice %7 {offsets = [0, 0, 0], sizes = [16, 16, 1], strides = [1, 1, 1]} : vector<17x17x1xbf16> to vector<16x16x1xbf16>
    %49 = vector.shape_cast %48 : vector<16x16x1xbf16> to vector<256x1xbf16>
    %50 = arith.extf %49 : vector<256x1xbf16> to vector<256x1xf32>
    %c4 = arith.constant 4 : index
    %c0_22 = arith.constant 0 : index
    %51 = vector.load %arg5[%c4, %c0_22] : memref<9x8xbf16, #tpu.memory_space<vmem>>, vector<1x8xbf16>
    %52 = arith.extf %51 : vector<1x8xbf16> to vector<1x8xf32>
    %53 = vector.broadcast %50 : vector<256x1xf32> to vector<256x8xf32>
    %54 = vector.broadcast %52 : vector<1x8xf32> to vector<256x8xf32>
    %55 = arith.mulf %53, %54 : vector<256x8xf32>
    %56 = arith.addf %47, %55 : vector<256x8xf32>
    %57 = vector.extract_strided_slice %5 {offsets = [0, 1, 0], sizes = [16, 16, 1], strides = [1, 1, 1]} : vector<17x17x1xbf16> to vector<16x16x1xbf16>
    %58 = vector.shape_cast %57 : vector<16x16x1xbf16> to vector<256x1xbf16>
    %59 = arith.extf %58 : vector<256x1xbf16> to vector<256x1xf32>
    %c5 = arith.constant 5 : index
    %c0_23 = arith.constant 0 : index
    %60 = vector.load %arg5[%c5, %c0_23] : memref<9x8xbf16, #tpu.memory_space<vmem>>, vector<1x8xbf16>
    %61 = arith.extf %60 : vector<1x8xbf16> to vector<1x8xf32>
    %62 = vector.broadcast %59 : vector<256x1xf32> to vector<256x8xf32>
    %63 = vector.broadcast %61 : vector<1x8xf32> to vector<256x8xf32>
    %64 = arith.mulf %62, %63 : vector<256x8xf32>
    %65 = arith.addf %56, %64 : vector<256x8xf32>
    %66 = vector.extract_strided_slice %1 {offsets = [1, 0, 0], sizes = [16, 16, 1], strides = [1, 1, 1]} : vector<17x17x1xbf16> to vector<16x16x1xbf16>
    %67 = vector.shape_cast %66 : vector<16x16x1xbf16> to vector<256x1xbf16>
    %68 = arith.extf %67 : vector<256x1xbf16> to vector<256x1xf32>
    %c6 = arith.constant 6 : index
    %c0_24 = arith.constant 0 : index
    %69 = vector.load %arg5[%c6, %c0_24] : memref<9x8xbf16, #tpu.memory_space<vmem>>, vector<1x8xbf16>
    %70 = arith.extf %69 : vector<1x8xbf16> to vector<1x8xf32>
    %71 = vector.broadcast %68 : vector<256x1xf32> to vector<256x8xf32>
    %72 = vector.broadcast %70 : vector<1x8xf32> to vector<256x8xf32>
    %73 = arith.mulf %71, %72 : vector<256x8xf32>
    %74 = arith.addf %65, %73 : vector<256x8xf32>
    %75 = vector.extract_strided_slice %3 {offsets = [1, 0, 0], sizes = [16, 16, 1], strides = [1, 1, 1]} : vector<17x17x1xbf16> to vector<16x16x1xbf16>
    %76 = vector.shape_cast %75 : vector<16x16x1xbf16> to vector<256x1xbf16>
    %77 = arith.extf %76 : vector<256x1xbf16> to vector<256x1xf32>
    %c7 = arith.constant 7 : index
    %c0_25 = arith.constant 0 : index
    %78 = vector.load %arg5[%c7, %c0_25] : memref<9x8xbf16, #tpu.memory_space<vmem>>, vector<1x8xbf16>
    %79 = arith.extf %78 : vector<1x8xbf16> to vector<1x8xf32>
    %80 = vector.broadcast %77 : vector<256x1xf32> to vector<256x8xf32>
    %81 = vector.broadcast %79 : vector<1x8xf32> to vector<256x8xf32>
    %82 = arith.mulf %80, %81 : vector<256x8xf32>
    %83 = arith.addf %74, %82 : vector<256x8xf32>
    %84 = vector.extract_strided_slice %1 {offsets = [1, 1, 0], sizes = [16, 16, 1], strides = [1, 1, 1]} : vector<17x17x1xbf16> to vector<16x16x1xbf16>
    %85 = vector.shape_cast %84 : vector<16x16x1xbf16> to vector<256x1xbf16>
    %86 = arith.extf %85 : vector<256x1xbf16> to vector<256x1xf32>
    %c8 = arith.constant 8 : index
    %c0_26 = arith.constant 0 : index
    %87 = vector.load %arg5[%c8, %c0_26] : memref<9x8xbf16, #tpu.memory_space<vmem>>, vector<1x8xbf16>
    %88 = arith.extf %87 : vector<1x8xbf16> to vector<1x8xf32>
    %89 = vector.broadcast %86 : vector<256x1xf32> to vector<256x8xf32>
    %90 = vector.broadcast %88 : vector<1x8xf32> to vector<256x8xf32>
    %91 = arith.mulf %89, %90 : vector<256x8xf32>
    %92 = arith.addf %83, %91 : vector<256x8xf32>
    %cst_27 = arith.constant 0.000000e+00 : f32
    %93 = vector.broadcast %cst_27 : f32 to vector<256x8xf32>
    %94 = arith.maximumf %92, %93 : vector<256x8xf32>
    %c0_28 = arith.constant 0 : index
    %c0_29 = arith.constant 0 : index
    %c0_30 = arith.constant 0 : index
    %95 = vector.load %arg7[%c0_28, %c0_29, %c0_30] : memref<1x256x8xf32, #tpu.memory_space<vmem>>, vector<1x256x8xf32>
    %96 = vector.shape_cast %95 : vector<1x256x8xf32> to vector<256x8xf32>
    %97 = vector.shape_cast %94 : vector<256x8xf32> to vector<1x256x8xf32>
    tpu.vector_store %arg7[%c0_28, %c0_29, %c0_30], %97 {strides = array<i32>} : memref<1x256x8xf32, #tpu.memory_space<vmem>>, vector<1x256x8xf32>,
    return
  }
  func.func @transform_0(%arg0: i32) -> (i32, i32, i32, i32) {
    %c0_i32 = arith.constant 0 : i32
    %c0_i32_0 = arith.constant 0 : i32
    %c0_i32_1 = arith.constant 0 : i32
    %c0_i32_2 = arith.constant 0 : i32
    return %arg0, %c0_i32, %c0_i32_0, %c0_i32_1 : i32, i32, i32, i32
  }
  func.func @transform_1(%arg0: i32) -> (i32, i32, i32, i32) {
    %c0_i32 = arith.constant 0 : i32
    %c0_i32_0 = arith.constant 0 : i32
    %c0_i32_1 = arith.constant 0 : i32
    %c0_i32_2 = arith.constant 0 : i32
    return %arg0, %c0_i32, %c0_i32_0, %c0_i32_1 : i32, i32, i32, i32
  }
  func.func @transform_2(%arg0: i32) -> (i32, i32, i32, i32) {
    %c0_i32 = arith.constant 0 : i32
    %c0_i32_0 = arith.constant 0 : i32
    %c0_i32_1 = arith.constant 0 : i32
    %c0_i32_2 = arith.constant 0 : i32
    return %arg0, %c0_i32, %c0_i32_0, %c0_i32_1 : i32, i32, i32, i32
  }
  func.func @transform_3(%arg0: i32) -> (i32, i32, i32, i32) {
    %c0_i32 = arith.constant 0 : i32
    %c0_i32_0 = arith.constant 0 : i32
    %c0_i32_1 = arith.constant 0 : i32
    %c0_i32_2 = arith.constant 0 : i32
    return %arg0, %c0_i32, %c0_i32_0, %c0_i32_1 : i32, i32, i32, i32
  }
  func.func @transform_4(%arg0: i32) -> (i32, i32) {
    %c0_i32 = arith.constant 0 : i32
    %c0_i32_0 = arith.constant 0 : i32
    %c0_i32_1 = arith.constant 0 : i32
    return %c0_i32, %c0_i32_0 : i32, i32
  }
  func.func @transform_5(%arg0: i32) -> (i32, i32) {
    %c0_i32 = arith.constant 0 : i32
    %c0_i32_0 = arith.constant 0 : i32
    %c0_i32_1 = arith.constant 0 : i32
    return %c0_i32, %c0_i32_0 : i32, i32
  }
  func.func @transform_6(%arg0: i32) -> (i32, i32, i32) {
    %c0_i32 = arith.constant 0 : i32
    %c0_i32_0 = arith.constant 0 : i32
    %c0_i32_1 = arith.constant 0 : i32
    return %arg0, %c0_i32, %c0_i32_0 : i32, i32, i32
  }
}

</mosaic_0001>

<llo_original>
// kernel: tpu_custom_call.1
$region0: #{tpu_custom_call.1}
  #allocation0 [shape = 'u32[]', space=smem, size = 0x4, offset = 0x4, fixed_abs, tag = 'smem constant byte address 0x4 - core index']
  #allocation1 [shape = 'u32[144,128]{1,0:T(1,128)}', space=vmem, size = 0x12000, scoped, tag = 'internal scratch']
  %s0 = inlined_call_operand.vmem [shape: bf16[4,17,17,1], index: 0, kind: input, shape index: {}]
  %s1 = inlined_call_operand.vmem [shape: bf16[4,17,17,1], index: 1, kind: input, shape index: {}]
  %s2 = inlined_call_operand.vmem [shape: bf16[4,17,17,1], index: 2, kind: input, shape index: {}]
  %s3 = inlined_call_operand.vmem [shape: bf16[4,17,17,1], index: 3, kind: input, shape index: {}]
  %s4 = inlined_call_operand.vmem [shape: bf16[9,8], index: 4, kind: input, shape index: {}]
  %s5 = inlined_call_operand.vmem [shape: f32[1,8], index: 5, kind: input, shape index: {}]
  %s6 = inlined_call_operand.vmem [shape: f32[4,256,8], index: 6, kind: output, shape index: {}]
  %s7 = sld [smem:[#allocation0]]
  $region57: #{tpu_custom_call.1} parent=0
    _
  %s9 = ssub.s32 1, %s7
  %s10 = scalar_select 0, %s9, %s7
  loop: start=0, step=1, limit=6
  $region2: #{tpu_custom_call.1} parent=0 // loop_pre_header
    _
  $region3: #{tpu_custom_call.1} parent=0 // loop_header
    %s12 = sphi 0, %s16
    %p13 = scmp.ge.s32.totalorder %s12, 6
    %s22 = sphi 0, %s24
    %s25 = sphi 0, %s22
    %s26 = sphi 0, %s25
    %s42 = sphi 0, %s26
    %s48 = sphi 0, %s50
    %s51 = sphi 0, %s48
    %s52 = sphi 0, %s51
    %s68 = sphi 0, %s52
    %s74 = sphi 0, %s76
    %s77 = sphi 0, %s74
    %s78 = sphi 0, %s77
    %s94 = sphi 0, %s78
    %s100 = sphi 0, %s102
    %s103 = sphi 0, %s100
    %s104 = sphi 0, %s103
    %s120 = sphi 0, %s104
    %s124 = sphi 0, %s124
    %s126 = sphi 0, %s124
    %s127 = sphi 0, %s126
    %s141 = sphi 0, %s127
    %s145 = sphi 0, %s145
    %s147 = sphi 0, %s145
    %s148 = sphi 0, %s147
    %s162 = sphi 0, %s148
    %s168 = sphi 0, %s170
    %s171 = sphi 0, %s168
    %s172 = sphi 0, %s171
    %s188 = sphi 0, %s172
  $region4: #{tpu_custom_call.1} parent=0 // loop_header_branch
    %15 = sbr.rel (%p13) target = $region8
  $region5: #{tpu_custom_call.1} parent=0 // loop_body
    %s17 = ssub.s32 %s12, 1
    %s18 = ssub.s32 %s12, 2
    %s19 = sadd.s32 %s12, 1
    %s20 = ssub.s32 %s12, %s19
    %p21 = scmp.eq.s32.totalorder %s20, 0
    %s23 = sadd.s32 %s22, 1
    %s24 = scalar_select %p21, %s22, %s23
    %p27 = pneg %p21
    %p28 = scmp.eq.s32.totalorder %s12, 3
    %p29 = por %p27, %p28
    %p30 = scmp.ne.s32.totalorder %s22, %s25
    %p31 = scmp.eq.s32.totalorder %s12, 0
    %p32 = por %p30, %p31
    %p33 = scmp.ne.s32.totalorder %s22, %s25
    %p34 = scmp.eq.s32.totalorder %s17, 3
    %p35 = por %p33, %p34
    %p36 = scmp.ne.s32.totalorder %s25, %s26
    %p37 = scmp.eq.s32.totalorder %s17, 0
    %p38 = por %p36, %p37
    %p39 = scmp.ne.s32.totalorder %s25, %s26
    %p40 = scmp.eq.s32.totalorder %s18, 3
    %p41 = por %p39, %p40
    %p43 = scmp.ne.s32.totalorder %s26, %s42
    %p44 = scmp.eq.s32.totalorder %s18, 0
    %p45 = por %p43, %p44
    %s46 = ssub.s32 %s12, %s19
    %p47 = scmp.eq.s32.totalorder %s46, 0
    %s49 = sadd.s32 %s48, 1
    %s50 = scalar_select %p47, %s48, %s49
    %p53 = pneg %p47
    %p54 = scmp.eq.s32.totalorder %s12, 3
    %p55 = por %p53, %p54
    %p56 = scmp.ne.s32.totalorder %s48, %s51
    %p57 = scmp.eq.s32.totalorder %s12, 0
    %p58 = por %p56, %p57
    %p59 = scmp.ne.s32.totalorder %s48, %s51
    %p60 = scmp.eq.s32.totalorder %s17, 3
    %p61 = por %p59, %p60
    %p62 = scmp.ne.s32.totalorder %s51, %s52
    %p63 = scmp.eq.s32.totalorder %s17, 0
    %p64 = por %p62, %p63
    %p65 = scmp.ne.s32.totalorder %s51, %s52
    %p66 = scmp.eq.s32.totalorder %s18, 3
    %p67 = por %p65, %p66
    %p69 = scmp.ne.s32.totalorder %s52, %s68
    %p70 = scmp.eq.s32.totalorder %s18, 0
    %p71 = por %p69, %p70
    %s72 = ssub.s32 %s12, %s19
    %p73 = scmp.eq.s32.totalorder %s72, 0
    %s75 = sadd.s32 %s74, 1
    %s76 = scalar_select %p73, %s74, %s75
    %p79 = pneg %p73
    %p80 = scmp.eq.s32.totalorder %s12, 3
    %p81 = por %p79, %p80
    %p82 = scmp.ne.s32.totalorder %s74, %s77
    %p83 = scmp.eq.s32.totalorder %s12, 0
    %p84 = por %p82, %p83
    %p85 = scmp.ne.s32.totalorder %s74, %s77
    %p86 = scmp.eq.s32.totalorder %s17, 3
    %p87 = por %p85, %p86
    %p88 = scmp.ne.s32.totalorder %s77, %s78
    %p89 = scmp.eq.s32.totalorder %s17, 0
    %p90 = por %p88, %p89
    %p91 = scmp.ne.s32.totalorder %s77, %s78
    %p92 = scmp.eq.s32.totalorder %s18, 3
    %p93 = por %p91, %p92
    %p95 = scmp.ne.s32.totalorder %s78, %s94
    %p96 = scmp.eq.s32.totalorder %s18, 0
    %p97 = por %p95, %p96
    %s98 = ssub.s32 %s12, %s19
    %p99 = scmp.eq.s32.totalorder %s98, 0
    %s101 = sadd.s32 %s100, 1
    %s102 = scalar_select %p99, %s100, %s101
    %p105 = pneg %p99
    %p106 = scmp.eq.s32.totalorder %s12, 3
    %p107 = por %p105, %p106
    %p108 = scmp.ne.s32.totalorder %s100, %s103
    %p109 = scmp.eq.s32.totalorder %s12, 0
    %p110 = por %p108, %p109
    %p111 = scmp.ne.s32.totalorder %s100, %s103
    %p112 = scmp.eq.s32.totalorder %s17, 3
    %p113 = por %p111, %p112
    %p114 = scmp.ne.s32.totalorder %s103, %s104
    %p115 = scmp.eq.s32.totalorder %s17, 0
    %p116 = por %p114, %p115
    %p117 = scmp.ne.s32.totalorder %s103, %s104
    %p118 = scmp.eq.s32.totalorder %s18, 3
    %p119 = por %p117, %p118
    %p121 = scmp.ne.s32.totalorder %s104, %s120
    %p122 = scmp.eq.s32.totalorder %s18, 0
    %p123 = por %p121, %p122
    %s125 = sadd.s32 %s124, 1
    %p128 = scmp.eq.s32.totalorder %s12, 3
    %p129 = scmp.ne.s32.totalorder %s124, %s126
    %p130 = scmp.eq.s32.totalorder %s12, 0
    %p131 = por %p129, %p130
    %p132 = scmp.ne.s32.totalorder %s124, %s126
    %p133 = scmp.eq.s32.totalorder %s17, 3
    %p134 = por %p132, %p133
    %p135 = scmp.ne.s32.totalorder %s126, %s127
    %p136 = scmp.eq.s32.totalorder %s17, 0
    %p137 = por %p135, %p136
    %p138 = scmp.ne.s32.totalorder %s126, %s127
    %p139 = scmp.eq.s32.totalorder %s18, 3
    %p140 = por %p138, %p139
    %p142 = scmp.ne.s32.totalorder %s127, %s141
    %p143 = scmp.eq.s32.totalorder %s18, 0
    %p144 = por %p142, %p143
    %s146 = sadd.s32 %s145, 1
    %p149 = scmp.eq.s32.totalorder %s12, 3
    %p150 = scmp.ne.s32.totalorder %s145, %s147
    %p151 = scmp.eq.s32.totalorder %s12, 0
    %p152 = por %p150, %p151
    %p153 = scmp.ne.s32.totalorder %s145, %s147
    %p154 = scmp.eq.s32.totalorder %s17, 3
    %p155 = por %p153, %p154
    %p156 = scmp.ne.s32.totalorder %s147, %s148
    %p157 = scmp.eq.s32.totalorder %s17, 0
    %p158 = por %p156, %p157
    %p159 = scmp.ne.s32.totalorder %s147, %s148
    %p160 = scmp.eq.s32.totalorder %s18, 3
    %p161 = por %p159, %p160
    %p163 = scmp.ne.s32.totalorder %s148, %s162
    %p164 = scmp.eq.s32.totalorder %s18, 0
    %p165 = por %p163, %p164
    %s166 = ssub.s32 %s12, %s19
    %p167 = scmp.eq.s32.totalorder %s166, 0
    %s169 = sadd.s32 %s168, 1
    %s170 = scalar_select %p167, %s168, %s169
    %p173 = pneg %p167
    %p174 = scmp.eq.s32.totalorder %s12, 3
    %p175 = por %p173, %p174
    %p176 = scmp.ne.s32.totalorder %s168, %s171
    %p177 = scmp.eq.s32.totalorder %s12, 0
    %p178 = por %p176, %p177
    %p179 = scmp.ne.s32.totalorder %s168, %s171
    %p180 = scmp.eq.s32.totalorder %s17, 3
    %p181 = por %p179, %p180
    %p182 = scmp.ne.s32.totalorder %s171, %s172
    %p183 = scmp.eq.s32.totalorder %s17, 0
    %p184 = por %p182, %p183
    %p185 = scmp.ne.s32.totalorder %s171, %s172
    %p186 = scmp.eq.s32.totalorder %s18, 3
    %p187 = por %p185, %p186
    %p189 = scmp.ne.s32.totalorder %s172, %s188
    %p190 = scmp.eq.s32.totalorder %s18, 0
    %p191 = por %p189, %p190
    %p192 = scmp.le.s32.totalorder 1, %s12
    %p193 = scmp.lt.s32.totalorder %s12, 5
    %p194 = pnand %p192, %p193
    %p195 = pneg %p194
    // Predicated region
    $region9: #{tpu_custom_call.1} parent=5 // pred_check
      _
    $region10: #{tpu_custom_call.1} parent=5 // pred_check_branch
      %197 = sbr.rel (%p194) target = $region12
    $region11: #{tpu_custom_call.1} parent=5 // pred_region
      %s198 = ssub.s32 %s12, 1
      // Predicated region
      $region13: #{tpu_custom_call.1} parent=11 // pred_check
        %p199 = pneg %p137
      $region14: #{tpu_custom_call.1} parent=11 // pred_check_branch
        %201 = sbr.rel (%p199) target = $region16
      $region15: #{tpu_custom_call.1} parent=11 // pred_region
        _
      $region16: #{tpu_custom_call.1} parent=11 // pred_fallthru
        _
      // Predicated region
      $region17: #{tpu_custom_call.1} parent=11 // pred_check
        %p202 = pneg %p158
      $region18: #{tpu_custom_call.1} parent=11 // pred_check_branch
        %204 = sbr.rel (%p202) target = $region20
      $region19: #{tpu_custom_call.1} parent=11 // pred_region
        _
      $region20: #{tpu_custom_call.1} parent=11 // pred_fallthru
        _
    $region12: #{tpu_custom_call.1} parent=5 // pred_fallthru
      _
    %p205 = scmp.lt.s32.totalorder %s12, 4
    // Predicated region
    $region21: #{tpu_custom_call.1} parent=5 // pred_check
      %p206 = pneg %p205
    $region22: #{tpu_custom_call.1} parent=5 // pred_check_branch
      %208 = sbr.rel (%p206) target = $region24
    $region23: #{tpu_custom_call.1} parent=5 // pred_region
      // Predicated region
      $region25: #{tpu_custom_call.1} parent=23 // pred_check
        %p209 = pneg %p32
      $region26: #{tpu_custom_call.1} parent=23 // pred_check_branch
        %211 = sbr.rel (%p209) target = $region28
      $region27: #{tpu_custom_call.1} parent=23 // pred_region
        %p212 = scmp.lt.s32.totalorder %s12, 3
        %s213 = scalar_select %p212, %s12, 3
        %s214 = smul.addr %s213, 51
        %s215 = smul.addr %s214, 4
        %s216 = scalar_lea.vmem %s0, %s215
      $region28: #{tpu_custom_call.1} parent=23 // pred_fallthru
        _
      // Predicated region
      $region29: #{tpu_custom_call.1} parent=23 // pred_check
        %p217 = pneg %p58
      $region30: #{tpu_custom_call.1} parent=23 // pred_check_branch
        %219 = sbr.rel (%p217) target = $region32
      $region31: #{tpu_custom_call.1} parent=23 // pred_region
        %p220 = scmp.lt.s32.totalorder %s12, 3
        %s221 = scalar_select %p220, %s12, 3
        %s222 = smul.addr %s221, 51
        %s223 = smul.addr %s222, 4
        %s224 = scalar_lea.vmem %s1, %s223
      $region32: #{tpu_custom_call.1} parent=23 // pred_fallthru
        _
      // Predicated region
      $region33: #{tpu_custom_call.1} parent=23 // pred_check
        %p225 = pneg %p84
      $region34: #{tpu_custom_call.1} parent=23 // pred_check_branch
        %227 = sbr.rel (%p225) target = $region36
      $region35: #{tpu_custom_call.1} parent=23 // pred_region
        %p228 = scmp.lt.s32.totalorder %s12, 3
        %s229 = scalar_select %p228, %s12, 3
        %s230 = smul.addr %s229, 51
        %s231 = smul.addr %s230, 4
        %s232 = scalar_lea.vmem %s2, %s231
      $region36: #{tpu_custom_call.1} parent=23 // pred_fallthru
        _
      // Predicated region
      $region37: #{tpu_custom_call.1} parent=23 // pred_check
        %p233 = pneg %p110
      $region38: #{tpu_custom_call.1} parent=23 // pred_check_branch
        %235 = sbr.rel (%p233) target = $region40
      $region39: #{tpu_custom_call.1} parent=23 // pred_region
        %p236 = scmp.lt.s32.totalorder %s12, 3
        %s237 = scalar_select %p236, %s12, 3
        %s238 = smul.addr %s237, 51
        %s239 = smul.addr %s238, 4
        %s240 = scalar_lea.vmem %s3, %s239
      $region40: #{tpu_custom_call.1} parent=23 // pred_fallthru
        _
    $region24: #{tpu_custom_call.1} parent=5 // pred_fallthru
      _
    %p241 = scmp.le.s32.totalorder 1, %s12
    %p242 = scmp.lt.s32.totalorder %s12, 5
    %p243 = pnand %p241, %p242
    %p244 = pneg %p243
    // Predicated region
    $region41: #{tpu_custom_call.1} parent=5 // pred_check
      _
    $region42: #{tpu_custom_call.1} parent=5 // pred_check_branch
      %246 = sbr.rel (%p243) target = $region44
    $region43: #{tpu_custom_call.1} parent=5 // pred_region
      %s247 = ssub.s32 %s12, 1
      %p248 = scmp.lt.s32.totalorder %s17, 3
      %s249 = scalar_select %p248, %s17, 3
      %s250 = smul.addr %s249, 51
      %s251 = smul.addr %s250, 4
      %s252 = scalar_lea.vmem %s0, %s251
      %p253 = pneg %p38
      %p254 = pneg %p35
      %p255 = scmp.lt.s32.totalorder %s17, 3
      %s256 = scalar_select %p255, %s17, 3
      %s257 = smul.addr %s256, 51
      %s258 = smul.addr %s257, 4
      %s259 = scalar_lea.vmem %s1, %s258
      %p260 = pneg %p64
      %p261 = pneg %p61
      %p262 = scmp.lt.s32.totalorder %s17, 3
      %s263 = scalar_select %p262, %s17, 3
      %s264 = smul.addr %s263, 51
      %s265 = smul.addr %s264, 4
      %s266 = scalar_lea.vmem %s2, %s265
      %p267 = pneg %p90
      %p268 = pneg %p87
      %p269 = scmp.lt.s32.totalorder %s17, 3
      %s270 = scalar_select %p269, %s17, 3
      %s271 = smul.addr %s270, 51
      %s272 = smul.addr %s271, 4
      %s273 = scalar_lea.vmem %s3, %s272
      %p274 = pneg %p116
      %p275 = pneg %p113
      %p276 = pneg %p137
      %p277 = pneg %p134
      %p278 = pneg %p158
      %p279 = pneg %p155
      %p280 = pneg %p184
      %p281 = pneg %p181
      %p282 = scmp.lt.s32.totalorder %s17, 3
      %s283 = scalar_select %p282, %s17, 3
      %s284 = smul.addr %s283, 32
      %s285 = smul.addr %s284, 8
      %s286 = scalar_lea.vmem %s6, %s285
      %p287 = scmp.lt.s32.totalorder %s17, 3
      %s288 = scalar_select %p287, %s17, 3
      %s289 = smul.addr %s288, 51
      %s290 = smul.addr %s289, 4
      %s291 = scalar_lea.vmem %s0, %s290
      %p292 = scmp.lt.s32.totalorder %s17, 3
      %s293 = scalar_select %p292, %s17, 3
      %s294 = smul.addr %s293, 51
      %s295 = smul.addr %s294, 4
      %s296 = scalar_lea.vmem %s1, %s295
      %p297 = scmp.lt.s32.totalorder %s17, 3
      %s298 = scalar_select %p297, %s17, 3
      %s299 = smul.addr %s298, 51
      %s300 = smul.addr %s299, 4
      %s301 = scalar_lea.vmem %s2, %s300
      %p302 = scmp.lt.s32.totalorder %s17, 3
      %s303 = scalar_select %p302, %s17, 3
      %s304 = smul.addr %s303, 51
      %s305 = smul.addr %s304, 4
      %s306 = scalar_lea.vmem %s3, %s305
      %p307 = scmp.lt.s32.totalorder %s17, 3
      %s308 = scalar_select %p307, %s17, 3
      %s309 = smul.addr %s308, 32
      %s310 = smul.addr %s309, 8
      %s311 = scalar_lea.vmem %s6, %s310
      %v312 = vld [vmem:[%s291] sm:$0xf]
      %v313 = vld [vmem:[%s291 + $0x4] sm:$0xf]
      %v314 = vld [vmem:[%s291 + $0x8] sm:$0x1]
      %v315 = vld [vmem:[%s291 + $0xc] sm:$0xf]
      %v316 = vld [vmem:[%s291 + $0x10] sm:$0xf]
      %v317 = vld [vmem:[%s291 + $0x14] sm:$0x1]
      %v318 = vld [vmem:[%s291 + $0x18] sm:$0xf]
      %v319 = vld [vmem:[%s291 + $0x1c] sm:$0xf]
      %v320 = vld [vmem:[%s291 + $0x20] sm:$0x1]
      %v321 = vld [vmem:[%s291 + $0x24] sm:$0xf]
      %v322 = vld [vmem:[%s291 + $0x28] sm:$0xf]
      %v323 = vld [vmem:[%s291 + $0x2c] sm:$0x1]
      %v324 = vld [vmem:[%s291 + $0x30] sm:$0xf]
      %v325 = vld [vmem:[%s291 + $0x34] sm:$0xf]
      %v326 = vld [vmem:[%s291 + $0x38] sm:$0x1]
      %v327 = vld [vmem:[%s291 + $0x3c] sm:$0xf]
      %v328 = vld [vmem:[%s291 + $0x40] sm:$0xf]
      %v329 = vld [vmem:[%s291 + $0x44] sm:$0x1]
      %v330 = vld [vmem:[%s291 + $0x48] sm:$0xf]
      %v331 = vld [vmem:[%s291 + $0x4c] sm:$0xf]
      %v332 = vld [vmem:[%s291 + $0x50] sm:$0x1]
      %v333 = vld [vmem:[%s291 + $0x54] sm:$0xf]
      %v334 = vld [vmem:[%s291 + $0x58] sm:$0xf]
      %v335 = vld [vmem:[%s291 + $0x5c] sm:$0x1]
      %v336 = vld [vmem:[%s291 + $0x60] sm:$0xf]
      %v337 = vld [vmem:[%s291 + $0x64] sm:$0xf]
      %v338 = vld [vmem:[%s291 + $0x68] sm:$0x1]
      %v339 = vld [vmem:[%s291 + $0x6c] sm:$0xf]
      %v340 = vld [vmem:[%s291 + $0x70] sm:$0xf]
      %v341 = vld [vmem:[%s291 + $0x74] sm:$0x1]
      %v342 = vld [vmem:[%s291 + $0x78] sm:$0xf]
      %v343 = vld [vmem:[%s291 + $0x7c] sm:$0xf]
      %v344 = vld [vmem:[%s291 + $0x80] sm:$0x1]
      %v345 = vld [vmem:[%s291 + $0x84] sm:$0xf]
      %v346 = vld [vmem:[%s291 + $0x88] sm:$0xf]
      %v347 = vld [vmem:[%s291 + $0x8c] sm:$0x1]
      %v348 = vld [vmem:[%s291 + $0x90] sm:$0xf]
      %v349 = vld [vmem:[%s291 + $0x94] sm:$0xf]
      %v350 = vld [vmem:[%s291 + $0x98] sm:$0x1]
      %v351 = vld [vmem:[%s291 + $0x9c] sm:$0xf]
      %v352 = vld [vmem:[%s291 + $0xa0] sm:$0xf]
      %v353 = vld [vmem:[%s291 + $0xa4] sm:$0x1]
      %v354 = vld [vmem:[%s291 + $0xa8] sm:$0xf]
      %v355 = vld [vmem:[%s291 + $0xac] sm:$0xf]
      %v356 = vld [vmem:[%s291 + $0xb0] sm:$0x1]
      %v357 = vld [vmem:[%s291 + $0xb4] sm:$0xf]
      %v358 = vld [vmem:[%s291 + $0xb8] sm:$0xf]
      %v359 = vld [vmem:[%s291 + $0xbc] sm:$0x1]
      %v360 = vld [vmem:[%s291 + $0xc0] sm:$0xf]
      %v361 = vld [vmem:[%s291 + $0xc4] sm:$0xf]
      %v362 = vld [vmem:[%s291 + $0xc8] sm:$0x1]
      %v363 = vld [vmem:[%s296] sm:$0xf]
      %v364 = vld [vmem:[%s296 + $0x4] sm:$0xf]
      %v365 = vld [vmem:[%s296 + $0xc] sm:$0xf]
      %v366 = vld [vmem:[%s296 + $0x10] sm:$0xf]
      %v367 = vld [vmem:[%s296 + $0x18] sm:$0xf]
      %v368 = vld [vmem:[%s296 + $0x1c] sm:$0xf]
      %v369 = vld [vmem:[%s296 + $0x24] sm:$0xf]
      %v370 = vld [vmem:[%s296 + $0x28] sm:$0xf]
      %v371 = vld [vmem:[%s296 + $0x30] sm:$0xf]
      %v372 = vld [vmem:[%s296 + $0x34] sm:$0xf]
      %v373 = vld [vmem:[%s296 + $0x3c] sm:$0xf]
      %v374 = vld [vmem:[%s296 + $0x40] sm:$0xf]
      %v375 = vld [vmem:[%s296 + $0x48] sm:$0xf]
      %v376 = vld [vmem:[%s296 + $0x4c] sm:$0xf]
      %v377 = vld [vmem:[%s296 + $0x54] sm:$0xf]
      %v378 = vld [vmem:[%s296 + $0x58] sm:$0xf]
      %v379 = vld [vmem:[%s296 + $0x60] sm:$0xf]
      %v380 = vld [vmem:[%s296 + $0x64] sm:$0xf]
      %v381 = vld [vmem:[%s296 + $0x6c] sm:$0xf]
      %v382 = vld [vmem:[%s296 + $0x70] sm:$0xf]
      %v383 = vld [vmem:[%s296 + $0x78] sm:$0xf]
      %v384 = vld [vmem:[%s296 + $0x7c] sm:$0xf]
      %v385 = vld [vmem:[%s296 + $0x84] sm:$0xf]
      %v386 = vld [vmem:[%s296 + $0x88] sm:$0xf]
      %v387 = vld [vmem:[%s296 + $0x90] sm:$0xf]
      %v388 = vld [vmem:[%s296 + $0x94] sm:$0xf]
      %v389 = vld [vmem:[%s296 + $0x9c] sm:$0xf]
      %v390 = vld [vmem:[%s296 + $0xa0] sm:$0xf]
      %v391 = vld [vmem:[%s296 + $0xa8] sm:$0xf]
      %v392 = vld [vmem:[%s296 + $0xac] sm:$0xf]
      %v393 = vld [vmem:[%s296 + $0xb4] sm:$0xf]
      %v394 = vld [vmem:[%s296 + $0xb8] sm:$0xf]
      %v395 = vld [vmem:[%s296 + $0xc0] sm:$0xf]
      %v396 = vld [vmem:[%s296 + $0xc4] sm:$0xf]
      %v397 = vld [vmem:[%s301] sm:$0xf]
      %v398 = vld [vmem:[%s301 + $0x4] sm:$0xf]
      %v399 = vld [vmem:[%s301 + $0x8] sm:$0x1]
      %v400 = vld [vmem:[%s301 + $0xc] sm:$0xf]
      %v401 = vld [vmem:[%s301 + $0x10] sm:$0xf]
      %v402 = vld [vmem:[%s301 + $0x14] sm:$0x1]
      %v403 = vld [vmem:[%s301 + $0x18] sm:$0xf]
      %v404 = vld [vmem:[%s301 + $0x1c] sm:$0xf]
      %v405 = vld [vmem:[%s301 + $0x20] sm:$0x1]
      %v406 = vld [vmem:[%s301 + $0x24] sm:$0xf]
      %v407 = vld [vmem:[%s301 + $0x28] sm:$0xf]
      %v408 = vld [vmem:[%s301 + $0x2c] sm:$0x1]
      %v409 = vld [vmem:[%s301 + $0x30] sm:$0xf]
      %v410 = vld [vmem:[%s301 + $0x34] sm:$0xf]
      %v411 = vld [vmem:[%s301 + $0x38] sm:$0x1]
      %v412 = vld [vmem:[%s301 + $0x3c] sm:$0xf]
      %v413 = vld [vmem:[%s301 + $0x40] sm:$0xf]
      %v414 = vld [vmem:[%s301 + $0x44] sm:$0x1]
      %v415 = vld [vmem:[%s301 + $0x48] sm:$0xf]
      %v416 = vld [vmem:[%s301 + $0x4c] sm:$0xf]
      %v417 = vld [vmem:[%s301 + $0x50] sm:$0x1]
      %v418 = vld [vmem:[%s301 + $0x54] sm:$0xf]
      %v419 = vld [vmem:[%s301 + $0x58] sm:$0xf]
      %v420 = vld [vmem:[%s301 + $0x5c] sm:$0x1]
      %v421 = vld [vmem:[%s301 + $0x60] sm:$0xf]
      %v422 = vld [vmem:[%s301 + $0x64] sm:$0xf]
      %v423 = vld [vmem:[%s301 + $0x68] sm:$0x1]
      %v424 = vld [vmem:[%s301 + $0x6c] sm:$0xf]
      %v425 = vld [vmem:[%s301 + $0x70] sm:$0xf]
      %v426 = vld [vmem:[%s301 + $0x74] sm:$0x1]
      %v427 = vld [vmem:[%s301 + $0x78] sm:$0xf]
      %v428 = vld [vmem:[%s301 + $0x7c] sm:$0xf]
      %v429 = vld [vmem:[%s301 + $0x80] sm:$0x1]
      %v430 = vld [vmem:[%s301 + $0x84] sm:$0xf]
      %v431 = vld [vmem:[%s301 + $0x88] sm:$0xf]
      %v432 = vld [vmem:[%s301 + $0x8c] sm:$0x1]
      %v433 = vld [vmem:[%s301 + $0x90] sm:$0xf]
      %v434 = vld [vmem:[%s301 + $0x94] sm:$0xf]
      %v435 = vld [vmem:[%s301 + $0x98] sm:$0x1]
      %v436 = vld [vmem:[%s301 + $0x9c] sm:$0xf]
      %v437 = vld [vmem:[%s301 + $0xa0] sm:$0xf]
      %v438 = vld [vmem:[%s301 + $0xa4] sm:$0x1]
      %v439 = vld [vmem:[%s301 + $0xa8] sm:$0xf]
      %v440 = vld [vmem:[%s301 + $0xac] sm:$0xf]
      %v441 = vld [vmem:[%s301 + $0xb0] sm:$0x1]
      %v442 = vld [vmem:[%s301 + $0xb4] sm:$0xf]
      %v443 = vld [vmem:[%s301 + $0xb8] sm:$0xf]
      %v444 = vld [vmem:[%s301 + $0xbc] sm:$0x1]
      %v445 = vld [vmem:[%s306] sm:$0xf]
      %v446 = vld [vmem:[%s306 + $0x4] sm:$0xf]
      %v447 = vld [vmem:[%s306 + $0xc] sm:$0xf]
      %v448 = vld [vmem:[%s306 + $0x10] sm:$0xf]
      %v449 = vld [vmem:[%s306 + $0x18] sm:$0xf]
      %v450 = vld [vmem:[%s306 + $0x1c] sm:$0xf]
      %v451 = vld [vmem:[%s306 + $0x24] sm:$0xf]
      %v452 = vld [vmem:[%s306 + $0x28] sm:$0xf]
      %v453 = vld [vmem:[%s306 + $0x30] sm:$0xf]
      %v454 = vld [vmem:[%s306 + $0x34] sm:$0xf]
      %v455 = vld [vmem:[%s306 + $0x3c] sm:$0xf]
      %v456 = vld [vmem:[%s306 + $0x40] sm:$0xf]
      %v457 = vld [vmem:[%s306 + $0x48] sm:$0xf]
      %v458 = vld [vmem:[%s306 + $0x4c] sm:$0xf]
      %v459 = vld [vmem:[%s306 + $0x54] sm:$0xf]
      %v460 = vld [vmem:[%s306 + $0x58] sm:$0xf]
      %v461 = vld [vmem:[%s306 + $0x60] sm:$0xf]
      %v462 = vld [vmem:[%s306 + $0x64] sm:$0xf]
      %v463 = vld [vmem:[%s306 + $0x6c] sm:$0xf]
      %v464 = vld [vmem:[%s306 + $0x70] sm:$0xf]
      %v465 = vld [vmem:[%s306 + $0x78] sm:$0xf]
      %v466 = vld [vmem:[%s306 + $0x7c] sm:$0xf]
      %v467 = vld [vmem:[%s306 + $0x84] sm:$0xf]
      %v468 = vld [vmem:[%s306 + $0x88] sm:$0xf]
      %v469 = vld [vmem:[%s306 + $0x90] sm:$0xf]
      %v470 = vld [vmem:[%s306 + $0x94] sm:$0xf]
      %v471 = vld [vmem:[%s306 + $0x9c] sm:$0xf]
      %v472 = vld [vmem:[%s306 + $0xa0] sm:$0xf]
      %v473 = vld [vmem:[%s306 + $0xa8] sm:$0xf]
      %v474 = vld [vmem:[%s306 + $0xac] sm:$0xf]
      %v475 = vld [vmem:[%s306 + $0xb4] sm:$0xf]
      %v476 = vld [vmem:[%s306 + $0xb8] sm:$0xf]
      %v477 = vld [vmem:[%s5] sm:$0x1]
      %v479 = vlaneseq
      %v480 = vshrl.u32 %v479, 7
      %v481 = vsub.s32 0, %v480
      %v482 = vrot.slane %v477, %v481
      %v484 = vadd.f32 %v482, 0.0
      %v485 = vunpack.c.l.bf16 %v312
      %v486 = vunpack.c.l.bf16 %v313
      %v487 = vunpack.c.l.bf16 %v315
      %v488 = vunpack.c.l.bf16 %v316
      %v489 = vunpack.c.l.bf16 %v318
      %v490 = vunpack.c.l.bf16 %v319
      %v491 = vunpack.c.l.bf16 %v321
      %v492 = vunpack.c.l.bf16 %v322
      %v493 = vunpack.c.l.bf16 %v324
      %v494 = vunpack.c.l.bf16 %v325
      %v495 = vunpack.c.l.bf16 %v327
      %v496 = vunpack.c.l.bf16 %v328
      %v497 = vunpack.c.l.bf16 %v330
      %v498 = vunpack.c.l.bf16 %v331
      %v499 = vunpack.c.l.bf16 %v333
      %v500 = vunpack.c.l.bf16 %v334
      %v501 = vunpack.c.l.bf16 %v336
      %v502 = vunpack.c.l.bf16 %v337
      %v503 = vunpack.c.l.bf16 %v339
      %v504 = vunpack.c.l.bf16 %v340
      %v505 = vunpack.c.l.bf16 %v342
      %v506 = vunpack.c.l.bf16 %v343
      %v507 = vunpack.c.l.bf16 %v345
      %v508 = vunpack.c.l.bf16 %v346
      %v509 = vunpack.c.l.bf16 %v348
      %v510 = vunpack.c.l.bf16 %v349
      %v511 = vunpack.c.l.bf16 %v351
      %v512 = vunpack.c.l.bf16 %v352
      %v513 = vunpack.c.l.bf16 %v354
      %v514 = vunpack.c.l.bf16 %v355
      %v515 = vunpack.c.l.bf16 %v357
      %v516 = vunpack.c.l.bf16 %v358
      %v517 = vld [vmem:[%s4] sm:$0x1]
      %v518 = vunpack.c.l.bf16 %v517
      %520 = vset.pattern.permute.xlu0 0
      %521 = vperm.xlu0 %520, %v485
      %v522 = vpop.permute.xlu0 %521
      %525 = vset.pattern.permute.xlu0 0
      %526 = vperm.xlu0 %525, %v486
      %v527 = vpop.permute.xlu0 %526
      %530 = vset.pattern.permute.xlu0 0
      %531 = vperm.xlu0 %530, %v487
      %v532 = vpop.permute.xlu0 %531
      %535 = vset.pattern.permute.xlu0 0
      %536 = vperm.xlu0 %535, %v488
      %v537 = vpop.permute.xlu0 %536
      %540 = vset.pattern.permute.xlu0 0
      %541 = vperm.xlu0 %540, %v489
      %v542 = vpop.permute.xlu0 %541
      %545 = vset.pattern.permute.xlu0 0
      %546 = vperm.xlu0 %545, %v490
      %v547 = vpop.permute.xlu0 %546
      %550 = vset.pattern.permute.xlu0 0
      %551 = vperm.xlu0 %550, %v491
      %v552 = vpop.permute.xlu0 %551
      %555 = vset.pattern.permute.xlu0 0
      %556 = vperm.xlu0 %555, %v492
      %v557 = vpop.permute.xlu0 %556
      %560 = vset.pattern.permute.xlu0 0
      %561 = vperm.xlu0 %560, %v493
      %v562 = vpop.permute.xlu0 %561
      %565 = vset.pattern.permute.xlu0 0
      %566 = vperm.xlu0 %565, %v494
      %v567 = vpop.permute.xlu0 %566
      %570 = vset.pattern.permute.xlu0 0
      %571 = vperm.xlu0 %570, %v495
      %v572 = vpop.permute.xlu0 %571
      %575 = vset.pattern.permute.xlu0 0
      %576 = vperm.xlu0 %575, %v496
      %v577 = vpop.permute.xlu0 %576
      %580 = vset.pattern.permute.xlu0 0
      %581 = vperm.xlu0 %580, %v497
      %v582 = vpop.permute.xlu0 %581
      %585 = vset.pattern.permute.xlu0 0
      %586 = vperm.xlu0 %585, %v498
      %v587 = vpop.permute.xlu0 %586
      %590 = vset.pattern.permute.xlu0 0
      %591 = vperm.xlu0 %590, %v499
      %v592 = vpop.permute.xlu0 %591
      %595 = vset.pattern.permute.xlu0 0
      %596 = vperm.xlu0 %595, %v500
      %v597 = vpop.permute.xlu0 %596
      %600 = vset.pattern.permute.xlu0 0
      %601 = vperm.xlu0 %600, %v501
      %v602 = vpop.permute.xlu0 %601
      %605 = vset.pattern.permute.xlu0 0
      %606 = vperm.xlu0 %605, %v502
      %v607 = vpop.permute.xlu0 %606
      %610 = vset.pattern.permute.xlu0 0
      %611 = vperm.xlu0 %610, %v503
      %v612 = vpop.permute.xlu0 %611
      %615 = vset.pattern.permute.xlu0 0
      %616 = vperm.xlu0 %615, %v504
      %v617 = vpop.permute.xlu0 %616
      %620 = vset.pattern.permute.xlu0 0
      %621 = vperm.xlu0 %620, %v505
      %v622 = vpop.permute.xlu0 %621
      %625 = vset.pattern.permute.xlu0 0
      %626 = vperm.xlu0 %625, %v506
      %v627 = vpop.permute.xlu0 %626
      %630 = vset.pattern.permute.xlu0 0
      %631 = vperm.xlu0 %630, %v507
      %v632 = vpop.permute.xlu0 %631
      %635 = vset.pattern.permute.xlu0 0
      %636 = vperm.xlu0 %635, %v508
      %v637 = vpop.permute.xlu0 %636
      %640 = vset.pattern.permute.xlu0 0
      %641 = vperm.xlu0 %640, %v509
      %v642 = vpop.permute.xlu0 %641
      %645 = vset.pattern.permute.xlu0 0
      %646 = vperm.xlu0 %645, %v510
      %v647 = vpop.permute.xlu0 %646
      %650 = vset.pattern.permute.xlu0 0
      %651 = vperm.xlu0 %650, %v511
      %v652 = vpop.permute.xlu0 %651
      %655 = vset.pattern.permute.xlu0 0
      %656 = vperm.xlu0 %655, %v512
      %v657 = vpop.permute.xlu0 %656
      %660 = vset.pattern.permute.xlu0 0
      %661 = vperm.xlu0 %660, %v513
      %v662 = vpop.permute.xlu0 %661
      %665 = vset.pattern.permute.xlu0 0
      %666 = vperm.xlu0 %665, %v514
      %v667 = vpop.permute.xlu0 %666
      %670 = vset.pattern.permute.xlu0 0
      %671 = vperm.xlu0 %670, %v515
      %v672 = vpop.permute.xlu0 %671
      %675 = vset.pattern.permute.xlu0 0
      %676 = vperm.xlu0 %675, %v516
      %v677 = vpop.permute.xlu0 %676
      %v679 = vlaneseq
      %v680 = vshrl.u32 %v679, 7
      %v681 = vsub.s32 0, %v680
      %v682 = vrot.slane %v518, %v681
      %v683 = vmul.f32 %v522, %v682
      %v684 = vmul.f32 %v527, %v682
      %v685 = vmul.f32 %v532, %v682
      %v686 = vmul.f32 %v537, %v682
      %v687 = vmul.f32 %v542, %v682
      %v688 = vmul.f32 %v547, %v682
      %v689 = vmul.f32 %v552, %v682
      %v690 = vmul.f32 %v557, %v682
      %v691 = vmul.f32 %v562, %v682
      %v692 = vmul.f32 %v567, %v682
      %v693 = vmul.f32 %v572, %v682
      %v694 = vmul.f32 %v577, %v682
      %v695 = vmul.f32 %v582, %v682
      %v696 = vmul.f32 %v587, %v682
      %v697 = vmul.f32 %v592, %v682
      %v698 = vmul.f32 %v597, %v682
      %v699 = vmul.f32 %v602, %v682
      %v700 = vmul.f32 %v607, %v682
      %v701 = vmul.f32 %v612, %v682
      %v702 = vmul.f32 %v617, %v682
      %v703 = vmul.f32 %v622, %v682
      %v704 = vmul.f32 %v627, %v682
      %v705 = vmul.f32 %v632, %v682
      %v706 = vmul.f32 %v637, %v682
      %v707 = vmul.f32 %v642, %v682
      %v708 = vmul.f32 %v647, %v682
      %v709 = vmul.f32 %v652, %v682
      %v710 = vmul.f32 %v657, %v682
      %v711 = vmul.f32 %v662, %v682
      %v712 = vmul.f32 %v667, %v682
      %v713 = vmul.f32 %v672, %v682
      %v714 = vmul.f32 %v677, %v682
      %v715 = vadd.f32 %v484, %v683
      %v716 = vadd.f32 %v484, %v684
      %v717 = vadd.f32 %v484, %v685
      %v718 = vadd.f32 %v484, %v686
      %v719 = vadd.f32 %v484, %v687
      %v720 = vadd.f32 %v484, %v688
      %v721 = vadd.f32 %v484, %v689
      %v722 = vadd.f32 %v484, %v690
      %v723 = vadd.f32 %v484, %v691
      %v724 = vadd.f32 %v484, %v692
      %v725 = vadd.f32 %v484, %v693
      %v726 = vadd.f32 %v484, %v694
      %v727 = vadd.f32 %v484, %v695
      %v728 = vadd.f32 %v484, %v696
      %v729 = vadd.f32 %v484, %v697
      %v730 = vadd.f32 %v484, %v698
      %v731 = vadd.f32 %v484, %v699
      %v732 = vadd.f32 %v484, %v700
      %v733 = vadd.f32 %v484, %v701
      %v734 = vadd.f32 %v484, %v702
      %v735 = vadd.f32 %v484, %v703
      %v736 = vadd.f32 %v484, %v704
      %v737 = vadd.f32 %v484, %v705
      %v738 = vadd.f32 %v484, %v706
      %v739 = vadd.f32 %v484, %v707
      %v740 = vadd.f32 %v484, %v708
      %v741 = vadd.f32 %v484, %v709
      %v742 = vadd.f32 %v484, %v710
      %v743 = vadd.f32 %v484, %v711
      %v744 = vadd.f32 %v484, %v712
      %v745 = vadd.f32 %v484, %v713
      %v746 = vadd.f32 %v484, %v714
      %v747 = vunpack.c.l.bf16 %v363
      %v748 = vunpack.c.l.bf16 %v364
      %v749 = vunpack.c.l.bf16 %v365
      %v750 = vunpack.c.l.bf16 %v366
      %v751 = vunpack.c.l.bf16 %v367
      %v752 = vunpack.c.l.bf16 %v368
      %v753 = vunpack.c.l.bf16 %v369
      %v754 = vunpack.c.l.bf16 %v370
      %v755 = vunpack.c.l.bf16 %v371
      %v756 = vunpack.c.l.bf16 %v372
      %v757 = vunpack.c.l.bf16 %v373
      %v758 = vunpack.c.l.bf16 %v374
      %v759 = vunpack.c.l.bf16 %v375
      %v760 = vunpack.c.l.bf16 %v376
      %v761 = vunpack.c.l.bf16 %v377
      %v762 = vunpack.c.l.bf16 %v378
      %v763 = vunpack.c.l.bf16 %v379
      %v764 = vunpack.c.l.bf16 %v380
      %v765 = vunpack.c.l.bf16 %v381
      %v766 = vunpack.c.l.bf16 %v382
      %v767 = vunpack.c.l.bf16 %v383
      %v768 = vunpack.c.l.bf16 %v384
      %v769 = vunpack.c.l.bf16 %v385
      %v770 = vunpack.c.l.bf16 %v386
      %v771 = vunpack.c.l.bf16 %v387
      %v772 = vunpack.c.l.bf16 %v388
      %v773 = vunpack.c.l.bf16 %v389
      %v774 = vunpack.c.l.bf16 %v390
      %v775 = vunpack.c.l.bf16 %v391
      %v776 = vunpack.c.l.bf16 %v392
      %v777 = vunpack.c.l.bf16 %v393
      %v778 = vunpack.c.l.bf16 %v394
      %780 = vset.pattern.permute.xlu0 0
      %781 = vperm.xlu0 %780, %v747
      %v782 = vpop.permute.xlu0 %781
      %785 = vset.pattern.permute.xlu0 0
      %786 = vperm.xlu0 %785, %v748
      %v787 = vpop.permute.xlu0 %786
      %790 = vset.pattern.permute.xlu0 0
      %791 = vperm.xlu0 %790, %v749
      %v792 = vpop.permute.xlu0 %791
      %795 = vset.pattern.permute.xlu0 0
      %796 = vperm.xlu0 %795, %v750
      %v797 = vpop.permute.xlu0 %796
      %800 = vset.pattern.permute.xlu0 0
      %801 = vperm.xlu0 %800, %v751
      %v802 = vpop.permute.xlu0 %801
      %805 = vset.pattern.permute.xlu0 0
      %806 = vperm.xlu0 %805, %v752
      %v807 = vpop.permute.xlu0 %806
      %810 = vset.pattern.permute.xlu0 0
      %811 = vperm.xlu0 %810, %v753
      %v812 = vpop.permute.xlu0 %811
      %815 = vset.pattern.permute.xlu0 0
      %816 = vperm.xlu0 %815, %v754
      %v817 = vpop.permute.xlu0 %816
      %820 = vset.pattern.permute.xlu0 0
      %821 = vperm.xlu0 %820, %v755
      %v822 = vpop.permute.xlu0 %821
      %825 = vset.pattern.permute.xlu0 0
      %826 = vperm.xlu0 %825, %v756
      %v827 = vpop.permute.xlu0 %826
      %830 = vset.pattern.permute.xlu0 0
      %831 = vperm.xlu0 %830, %v757
      %v832 = vpop.permute.xlu0 %831
      %835 = vset.pattern.permute.xlu0 0
      %836 = vperm.xlu0 %835, %v758
      %v837 = vpop.permute.xlu0 %836
      %840 = vset.pattern.permute.xlu0 0
      %841 = vperm.xlu0 %840, %v759
      %v842 = vpop.permute.xlu0 %841
      %845 = vset.pattern.permute.xlu0 0
      %846 = vperm.xlu0 %845, %v760
      %v847 = vpop.permute.xlu0 %846
      %850 = vset.pattern.permute.xlu0 0
      %851 = vperm.xlu0 %850, %v761
      %v852 = vpop.permute.xlu0 %851
      %855 = vset.pattern.permute.xlu0 0
      %856 = vperm.xlu0 %855, %v762
      %v857 = vpop.permute.xlu0 %856
      %860 = vset.pattern.permute.xlu0 0
      %861 = vperm.xlu0 %860, %v763
      %v862 = vpop.permute.xlu0 %861
      %865 = vset.pattern.permute.xlu0 0
      %866 = vperm.xlu0 %865, %v764
      %v867 = vpop.permute.xlu0 %866
      %870 = vset.pattern.permute.xlu0 0
      %871 = vperm.xlu0 %870, %v765
      %v872 = vpop.permute.xlu0 %871
      %875 = vset.pattern.permute.xlu0 0
      %876 = vperm.xlu0 %875, %v766
      %v877 = vpop.permute.xlu0 %876
      %880 = vset.pattern.permute.xlu0 0
      %881 = vperm.xlu0 %880, %v767
      %v882 = vpop.permute.xlu0 %881
      %885 = vset.pattern.permute.xlu0 0
      %886 = vperm.xlu0 %885, %v768
      %v887 = vpop.permute.xlu0 %886
      %890 = vset.pattern.permute.xlu0 0
      %891 = vperm.xlu0 %890, %v769
      %v892 = vpop.permute.xlu0 %891
      %895 = vset.pattern.permute.xlu0 0
      %896 = vperm.xlu0 %895, %v770
      %v897 = vpop.permute.xlu0 %896
      %900 = vset.pattern.permute.xlu0 0
      %901 = vperm.xlu0 %900, %v771
      %v902 = vpop.permute.xlu0 %901
      %905 = vset.pattern.permute.xlu0 0
      %906 = vperm.xlu0 %905, %v772
      %v907 = vpop.permute.xlu0 %906
      %910 = vset.pattern.permute.xlu0 0
      %911 = vperm.xlu0 %910, %v773
      %v912 = vpop.permute.xlu0 %911
      %915 = vset.pattern.permute.xlu0 0
      %916 = vperm.xlu0 %915, %v774
      %v917 = vpop.permute.xlu0 %916
      %920 = vset.pattern.permute.xlu0 0
      %921 = vperm.xlu0 %920, %v775
      %v922 = vpop.permute.xlu0 %921
      %925 = vset.pattern.permute.xlu0 0
      %926 = vperm.xlu0 %925, %v776
      %v927 = vpop.permute.xlu0 %926
      %930 = vset.pattern.permute.xlu0 0
      %931 = vperm.xlu0 %930, %v777
      %v932 = vpop.permute.xlu0 %931
      %935 = vset.pattern.permute.xlu0 0
      %936 = vperm.xlu0 %935, %v778
      %v937 = vpop.permute.xlu0 %936
      %v939 = vlaneseq
      %v940 = vshrl.u32 %v939, 7
      %v941 = vsub.s32 1, %v940
      %v942 = vrot.slane %v518, %v941
      %v943 = vmul.f32 %v782, %v942
      %v944 = vmul.f32 %v787, %v942
      %v945 = vmul.f32 %v792, %v942
      %v946 = vmul.f32 %v797, %v942
      %v947 = vmul.f32 %v802, %v942
      %v948 = vmul.f32 %v807, %v942
      %v949 = vmul.f32 %v812, %v942
      %v950 = vmul.f32 %v817, %v942
      %v951 = vmul.f32 %v822, %v942
      %v952 = vmul.f32 %v827, %v942
      %v953 = vmul.f32 %v832, %v942
      %v954 = vmul.f32 %v837, %v942
      %v955 = vmul.f32 %v842, %v942
      %v956 = vmul.f32 %v847, %v942
      %v957 = vmul.f32 %v852, %v942
      %v958 = vmul.f32 %v857, %v942
      %v959 = vmul.f32 %v862, %v942
      %v960 = vmul.f32 %v867, %v942
      %v961 = vmul.f32 %v872, %v942
      %v962 = vmul.f32 %v877, %v942
      %v963 = vmul.f32 %v882, %v942
      %v964 = vmul.f32 %v887, %v942
      %v965 = vmul.f32 %v892, %v942
      %v966 = vmul.f32 %v897, %v942
      %v967 = vmul.f32 %v902, %v942
      %v968 = vmul.f32 %v907, %v942
      %v969 = vmul.f32 %v912, %v942
      %v970 = vmul.f32 %v917, %v942
      %v971 = vmul.f32 %v922, %v942
      %v972 = vmul.f32 %v927, %v942
      %v973 = vmul.f32 %v932, %v942
      %v974 = vmul.f32 %v937, %v942
      %v975 = vadd.f32 %v715, %v943
      %v976 = vadd.f32 %v716, %v944
      %v977 = vadd.f32 %v717, %v945
      %v978 = vadd.f32 %v718, %v946
      %v979 = vadd.f32 %v719, %v947
      %v980 = vadd.f32 %v720, %v948
      %v981 = vadd.f32 %v721, %v949
      %v982 = vadd.f32 %v722, %v950
      %v983 = vadd.f32 %v723, %v951
      %v984 = vadd.f32 %v724, %v952
      %v985 = vadd.f32 %v725, %v953
      %v986 = vadd.f32 %v726, %v954
      %v987 = vadd.f32 %v727, %v955
      %v988 = vadd.f32 %v728, %v956
      %v989 = vadd.f32 %v729, %v957
      %v990 = vadd.f32 %v730, %v958
      %v991 = vadd.f32 %v731, %v959
      %v992 = vadd.f32 %v732, %v960
      %v993 = vadd.f32 %v733, %v961
      %v994 = vadd.f32 %v734, %v962
      %v995 = vadd.f32 %v735, %v963
      %v996 = vadd.f32 %v736, %v964
      %v997 = vadd.f32 %v737, %v965
      %v998 = vadd.f32 %v738, %v966
      %v999 = vadd.f32 %v739, %v967
      %v1000 = vadd.f32 %v740, %v968
      %v1001 = vadd.f32 %v741, %v969
      %v1002 = vadd.f32 %v742, %v970
      %v1003 = vadd.f32 %v743, %v971
      %v1004 = vadd.f32 %v744, %v972
      %v1005 = vadd.f32 %v745, %v973
      %v1006 = vadd.f32 %v746, %v974
      %vm1007 = vsmask.f32 3328
      %vm1008 = vsmask.f32 7440
      %vm1009 = vmor %vm1007, %vm1008
      %v1011 = vshrl.u32 %v312, 16
      %v1013 = vrot.slane %v1011, 4
      %v1014 = vshll.u32 %v312, 16
      %v1016 = vrot.slane %v1014, 5
      %v1017 = vor.u32 %v1013, %v1016
      %v1018 = vrot.slane %v1017, 4
      %v1020 = vshll.u32 %v313, 16
      %v1022 = vrot.slane %v1020, 5
      %v1023 = vsel %vm1009, %v1018, %v1022
      %v1024 = vshrl.u32 %v313, 16
      %v1026 = vrot.slane %v1024, 4
      %v1027 = vor.u32 %v1026, %v1022
      %v1028 = vrot.slane %v1027, 4
      %v1030 = vshll.u32 %v314, 16
      %v1032 = vrot.slane %v1030, 5
      %v1033 = vsel %vm1009, %v1028, %v1032
      %v1035 = vshrl.u32 %v315, 16
      %v1037 = vrot.slane %v1035, 4
      %v1038 = vshll.u32 %v315, 16
      %v1040 = vrot.slane %v1038, 5
      %v1041 = vor.u32 %v1037, %v1040
      %v1042 = vrot.slane %v1041, 4
      %v1044 = vshll.u32 %v316, 16
      %v1046 = vrot.slane %v1044, 5
      %v1047 = vsel %vm1009, %v1042, %v1046
      %v1048 = vshrl.u32 %v316, 16
      %v1050 = vrot.slane %v1048, 4
      %v1051 = vor.u32 %v1050, %v1046
      %v1052 = vrot.slane %v1051, 4
      %v1054 = vshll.u32 %v317, 16
      %v1056 = vrot.slane %v1054, 5
      %v1057 = vsel %vm1009, %v1052, %v1056
      %v1059 = vshrl.u32 %v318, 16
      %v1061 = vrot.slane %v1059, 4
      %v1062 = vshll.u32 %v318, 16
      %v1064 = vrot.slane %v1062, 5
      %v1065 = vor.u32 %v1061, %v1064
      %v1066 = vrot.slane %v1065, 4
      %v1068 = vshll.u32 %v319, 16
      %v1070 = vrot.slane %v1068, 5
      %v1071 = vsel %vm1009, %v1066, %v1070
      %v1072 = vshrl.u32 %v319, 16
      %v1074 = vrot.slane %v1072, 4
      %v1075 = vor.u32 %v1074, %v1070
      %v1076 = vrot.slane %v1075, 4
      %v1078 = vshll.u32 %v320, 16
      %v1080 = vrot.slane %v1078, 5
      %v1081 = vsel %vm1009, %v1076, %v1080
      %v1083 = vshrl.u32 %v321, 16
      %v1085 = vrot.slane %v1083, 4
      %v1086 = vshll.u32 %v321, 16
      %v1088 = vrot.slane %v1086, 5
      %v1089 = vor.u32 %v1085, %v1088
      %v1090 = vrot.slane %v1089, 4
      %v1092 = vshll.u32 %v322, 16
      %v1094 = vrot.slane %v1092, 5
      %v1095 = vsel %vm1009, %v1090, %v1094
      %v1096 = vshrl.u32 %v322, 16
      %v1098 = vrot.slane %v1096, 4
      %v1099 = vor.u32 %v1098, %v1094
      %v1100 = vrot.slane %v1099, 4
      %v1102 = vshll.u32 %v323, 16
      %v1104 = vrot.slane %v1102, 5
      %v1105 = vsel %vm1009, %v1100, %v1104
      %v1107 = vshrl.u32 %v324, 16
      %v1109 = vrot.slane %v1107, 4
      %v1110 = vshll.u32 %v324, 16
      %v1112 = vrot.slane %v1110, 5
      %v1113 = vor.u32 %v1109, %v1112
      %v1114 = vrot.slane %v1113, 4
      %v1116 = vshll.u32 %v325, 16
      %v1118 = vrot.slane %v1116, 5
      %v1119 = vsel %vm1009, %v1114, %v1118
      %v1120 = vshrl.u32 %v325, 16
      %v1122 = vrot.slane %v1120, 4
      %v1123 = vor.u32 %v1122, %v1118
      %v1124 = vrot.slane %v1123, 4
      %v1126 = vshll.u32 %v326, 16
      %v1128 = vrot.slane %v1126, 5
      %v1129 = vsel %vm1009, %v1124, %v1128
      %v1131 = vshrl.u32 %v327, 16
      %v1133 = vrot.slane %v1131, 4
      %v1134 = vshll.u32 %v327, 16
      %v1136 = vrot.slane %v1134, 5
      %v1137 = vor.u32 %v1133, %v1136
      %v1138 = vrot.slane %v1137, 4
      %v1140 = vshll.u32 %v328, 16
      %v1142 = vrot.slane %v1140, 5
      %v1143 = vsel %vm1009, %v1138, %v1142
      %v1144 = vshrl.u32 %v328, 16
      %v1146 = vrot.slane %v1144, 4
      %v1147 = vor.u32 %v1146, %v1142
      %v1148 = vrot.slane %v1147, 4
      %v1150 = vshll.u32 %v329, 16
      %v1152 = vrot.slane %v1150, 5
      %v1153 = vsel %vm1009, %v1148, %v1152
      %v1155 = vshrl.u32 %v330, 16
      %v1157 = vrot.slane %v1155, 4
      %v1158 = vshll.u32 %v330, 16
      %v1160 = vrot.slane %v1158, 5
      %v1161 = vor.u32 %v1157, %v1160
      %v1162 = vrot.slane %v1161, 4
      %v1164 = vshll.u32 %v331, 16
      %v1166 = vrot.slane %v1164, 5
      %v1167 = vsel %vm1009, %v1162, %v1166
      %v1168 = vshrl.u32 %v331, 16
      %v1170 = vrot.slane %v1168, 4
      %v1171 = vor.u32 %v1170, %v1166
      %v1172 = vrot.slane %v1171, 4
      %v1174 = vshll.u32 %v332, 16
      %v1176 = vrot.slane %v1174, 5
      %v1177 = vsel %vm1009, %v1172, %v1176
      %v1179 = vshrl.u32 %v333, 16
      %v1181 = vrot.slane %v1179, 4
      %v1182 = vshll.u32 %v333, 16
      %v1184 = vrot.slane %v1182, 5
      %v1185 = vor.u32 %v1181, %v1184
      %v1186 = vrot.slane %v1185, 4
      %v1188 = vshll.u32 %v334, 16
      %v1190 = vrot.slane %v1188, 5
      %v1191 = vsel %vm1009, %v1186, %v1190
      %v1192 = vshrl.u32 %v334, 16
      %v1194 = vrot.slane %v1192, 4
      %v1195 = vor.u32 %v1194, %v1190
      %v1196 = vrot.slane %v1195, 4
      %v1198 = vshll.u32 %v335, 16
      %v1200 = vrot.slane %v1198, 5
      %v1201 = vsel %vm1009, %v1196, %v1200
      %v1203 = vshrl.u32 %v336, 16
      %v1205 = vrot.slane %v1203, 4
      %v1206 = vshll.u32 %v336, 16
      %v1208 = vrot.slane %v1206, 5
      %v1209 = vor.u32 %v1205, %v1208
      %v1210 = vrot.slane %v1209, 4
      %v1212 = vshll.u32 %v337, 16
      %v1214 = vrot.slane %v1212, 5
      %v1215 = vsel %vm1009, %v1210, %v1214
      %v1216 = vshrl.u32 %v337, 16
      %v1218 = vrot.slane %v1216, 4
      %v1219 = vor.u32 %v1218, %v1214
      %v1220 = vrot.slane %v1219, 4
      %v1222 = vshll.u32 %v338, 16
      %v1224 = vrot.slane %v1222, 5
      %v1225 = vsel %vm1009, %v1220, %v1224
      %v1227 = vshrl.u32 %v339, 16
      %v1229 = vrot.slane %v1227, 4
      %v1230 = vshll.u32 %v339, 16
      %v1232 = vrot.slane %v1230, 5
      %v1233 = vor.u32 %v1229, %v1232
      %v1234 = vrot.slane %v1233, 4
      %v1236 = vshll.u32 %v340, 16
      %v1238 = vrot.slane %v1236, 5
      %v1239 = vsel %vm1009, %v1234, %v1238
      %v1240 = vshrl.u32 %v340, 16
      %v1242 = vrot.slane %v1240, 4
      %v1243 = vor.u32 %v1242, %v1238
      %v1244 = vrot.slane %v1243, 4
      %v1246 = vshll.u32 %v341, 16
      %v1248 = vrot.slane %v1246, 5
      %v1249 = vsel %vm1009, %v1244, %v1248
      %v1251 = vshrl.u32 %v342, 16
      %v1253 = vrot.slane %v1251, 4
      %v1254 = vshll.u32 %v342, 16
      %v1256 = vrot.slane %v1254, 5
      %v1257 = vor.u32 %v1253, %v1256
      %v1258 = vrot.slane %v1257, 4
      %v1260 = vshll.u32 %v343, 16
      %v1262 = vrot.slane %v1260, 5
      %v1263 = vsel %vm1009, %v1258, %v1262
      %v1264 = vshrl.u32 %v343, 16
      %v1266 = vrot.slane %v1264, 4
      %v1267 = vor.u32 %v1266, %v1262
      %v1268 = vrot.slane %v1267, 4
      %v1270 = vshll.u32 %v344, 16
      %v1272 = vrot.slane %v1270, 5
      %v1273 = vsel %vm1009, %v1268, %v1272
      %v1275 = vshrl.u32 %v345, 16
      %v1277 = vrot.slane %v1275, 4
      %v1278 = vshll.u32 %v345, 16
      %v1280 = vrot.slane %v1278, 5
      %v1281 = vor.u32 %v1277, %v1280
      %v1282 = vrot.slane %v1281, 4
      %v1284 = vshll.u32 %v346, 16
      %v1286 = vrot.slane %v1284, 5
      %v1287 = vsel %vm1009, %v1282, %v1286
      %v1288 = vshrl.u32 %v346, 16
      %v1290 = vrot.slane %v1288, 4
      %v1291 = vor.u32 %v1290, %v1286
      %v1292 = vrot.slane %v1291, 4
      %v1294 = vshll.u32 %v347, 16
      %v1296 = vrot.slane %v1294, 5
      %v1297 = vsel %vm1009, %v1292, %v1296
      %v1299 = vshrl.u32 %v348, 16
      %v1301 = vrot.slane %v1299, 4
      %v1302 = vshll.u32 %v348, 16
      %v1304 = vrot.slane %v1302, 5
      %v1305 = vor.u32 %v1301, %v1304
      %v1306 = vrot.slane %v1305, 4
      %v1308 = vshll.u32 %v349, 16
      %v1310 = vrot.slane %v1308, 5
      %v1311 = vsel %vm1009, %v1306, %v1310
      %v1312 = vshrl.u32 %v349, 16
      %v1314 = vrot.slane %v1312, 4
      %v1315 = vor.u32 %v1314, %v1310
      %v1316 = vrot.slane %v1315, 4
      %v1318 = vshll.u32 %v350, 16
      %v1320 = vrot.slane %v1318, 5
      %v1321 = vsel %vm1009, %v1316, %v1320
      %v1323 = vshrl.u32 %v351, 16
      %v1325 = vrot.slane %v1323, 4
      %v1326 = vshll.u32 %v351, 16
      %v1328 = vrot.slane %v1326, 5
      %v1329 = vor.u32 %v1325, %v1328
      %v1330 = vrot.slane %v1329, 4
      %v1332 = vshll.u32 %v352, 16
      %v1334 = vrot.slane %v1332, 5
      %v1335 = vsel %vm1009, %v1330, %v1334
      %v1336 = vshrl.u32 %v352, 16
      %v1338 = vrot.slane %v1336, 4
      %v1339 = vor.u32 %v1338, %v1334
      %v1340 = vrot.slane %v1339, 4
      %v1342 = vshll.u32 %v353, 16
      %v1344 = vrot.slane %v1342, 5
      %v1345 = vsel %vm1009, %v1340, %v1344
      %v1347 = vshrl.u32 %v354, 16
      %v1349 = vrot.slane %v1347, 4
      %v1350 = vshll.u32 %v354, 16
      %v1352 = vrot.slane %v1350, 5
      %v1353 = vor.u32 %v1349, %v1352
      %v1354 = vrot.slane %v1353, 4
      %v1356 = vshll.u32 %v355, 16
      %v1358 = vrot.slane %v1356, 5
      %v1359 = vsel %vm1009, %v1354, %v1358
      %v1360 = vshrl.u32 %v355, 16
      %v1362 = vrot.slane %v1360, 4
      %v1363 = vor.u32 %v1362, %v1358
      %v1364 = vrot.slane %v1363, 4
      %v1366 = vshll.u32 %v356, 16
      %v1368 = vrot.slane %v1366, 5
      %v1369 = vsel %vm1009, %v1364, %v1368
      %v1371 = vshrl.u32 %v357, 16
      %v1373 = vrot.slane %v1371, 4
      %v1374 = vshll.u32 %v357, 16
      %v1376 = vrot.slane %v1374, 5
      %v1377 = vor.u32 %v1373, %v1376
      %v1378 = vrot.slane %v1377, 4
      %v1380 = vshll.u32 %v358, 16
      %v1382 = vrot.slane %v1380, 5
      %v1383 = vsel %vm1009, %v1378, %v1382
      %v1384 = vshrl.u32 %v358, 16
      %v1386 = vrot.slane %v1384, 4
      %v1387 = vor.u32 %v1386, %v1382
      %v1388 = vrot.slane %v1387, 4
      %v1390 = vshll.u32 %v359, 16
      %v1392 = vrot.slane %v1390, 5
      %v1393 = vsel %vm1009, %v1388, %v1392
      %v1426 = vunpack.c.l.bf16 %v1023
      %v1427 = vunpack.c.l.bf16 %v1033
      %v1428 = vunpack.c.l.bf16 %v1047
      %v1429 = vunpack.c.l.bf16 %v1057
      %v1430 = vunpack.c.l.bf16 %v1071
      %v1431 = vunpack.c.l.bf16 %v1081
      %v1432 = vunpack.c.l.bf16 %v1095
      %v1433 = vunpack.c.l.bf16 %v1105
      %v1434 = vunpack.c.l.bf16 %v1119
      %v1435 = vunpack.c.l.bf16 %v1129
      %v1436 = vunpack.c.l.bf16 %v1143
      %v1437 = vunpack.c.l.bf16 %v1153
      %v1438 = vunpack.c.l.bf16 %v1167
      %v1439 = vunpack.c.l.bf16 %v1177
      %v1440 = vunpack.c.l.bf16 %v1191
      %v1441 = vunpack.c.l.bf16 %v1201
      %v1442 = vunpack.c.l.bf16 %v1215
      %v1443 = vunpack.c.l.bf16 %v1225
      %v1444 = vunpack.c.l.bf16 %v1239
      %v1445 = vunpack.c.l.bf16 %v1249
      %v1446 = vunpack.c.l.bf16 %v1263
      %v1447 = vunpack.c.l.bf16 %v1273
      %v1448 = vunpack.c.l.bf16 %v1287
      %v1449 = vunpack.c.l.bf16 %v1297
      %v1450 = vunpack.c.l.bf16 %v1311
      %v1451 = vunpack.c.l.bf16 %v1321
      %v1452 = vunpack.c.l.bf16 %v1335
      %v1453 = vunpack.c.l.bf16 %v1345
      %v1454 = vunpack.c.l.bf16 %v1359
      %v1455 = vunpack.c.l.bf16 %v1369
      %v1456 = vunpack.c.l.bf16 %v1383
      %v1457 = vunpack.c.l.bf16 %v1393
      %v1458 = vld [vmem:[%s4] sm:$0x2]
      %v1459 = vunpack.c.l.bf16 %v1458
      %1461 = vset.pattern.permute.xlu0 0
      %1462 = vperm.xlu0 %1461, %v1426
      %v1463 = vpop.permute.xlu0 %1462
      %1466 = vset.pattern.permute.xlu0 0
      %1467 = vperm.xlu0 %1466, %v1427
      %v1468 = vpop.permute.xlu0 %1467
      %1471 = vset.pattern.permute.xlu0 0
      %1472 = vperm.xlu0 %1471, %v1428
      %v1473 = vpop.permute.xlu0 %1472
      %1476 = vset.pattern.permute.xlu0 0
      %1477 = vperm.xlu0 %1476, %v1429
      %v1478 = vpop.permute.xlu0 %1477
      %1481 = vset.pattern.permute.xlu0 0
      %1482 = vperm.xlu0 %1481, %v1430
      %v1483 = vpop.permute.xlu0 %1482
      %1486 = vset.pattern.permute.xlu0 0
      %1487 = vperm.xlu0 %1486, %v1431
      %v1488 = vpop.permute.xlu0 %1487
      %1491 = vset.pattern.permute.xlu0 0
      %1492 = vperm.xlu0 %1491, %v1432
      %v1493 = vpop.permute.xlu0 %1492
      %1496 = vset.pattern.permute.xlu0 0
      %1497 = vperm.xlu0 %1496, %v1433
      %v1498 = vpop.permute.xlu0 %1497
      %1501 = vset.pattern.permute.xlu0 0
      %1502 = vperm.xlu0 %1501, %v1434
      %v1503 = vpop.permute.xlu0 %1502
      %1506 = vset.pattern.permute.xlu0 0
      %1507 = vperm.xlu0 %1506, %v1435
      %v1508 = vpop.permute.xlu0 %1507
      %1511 = vset.pattern.permute.xlu0 0
      %1512 = vperm.xlu0 %1511, %v1436
      %v1513 = vpop.permute.xlu0 %1512
      %1516 = vset.pattern.permute.xlu0 0
      %1517 = vperm.xlu0 %1516, %v1437
      %v1518 = vpop.permute.xlu0 %1517
      %1521 = vset.pattern.permute.xlu0 0
      %1522 = vperm.xlu0 %1521, %v1438
      %v1523 = vpop.permute.xlu0 %1522
      %1526 = vset.pattern.permute.xlu0 0
      %1527 = vperm.xlu0 %1526, %v1439
      %v1528 = vpop.permute.xlu0 %1527
      %1531 = vset.pattern.permute.xlu0 0
      %1532 = vperm.xlu0 %1531, %v1440
      %v1533 = vpop.permute.xlu0 %1532
      %1536 = vset.pattern.permute.xlu0 0
      %1537 = vperm.xlu0 %1536, %v1441
      %v1538 = vpop.permute.xlu0 %1537
      %1541 = vset.pattern.permute.xlu0 0
      %1542 = vperm.xlu0 %1541, %v1442
      %v1543 = vpop.permute.xlu0 %1542
      %1546 = vset.pattern.permute.xlu0 0
      %1547 = vperm.xlu0 %1546, %v1443
      %v1548 = vpop.permute.xlu0 %1547
      %1551 = vset.pattern.permute.xlu0 0
      %1552 = vperm.xlu0 %1551, %v1444
      %v1553 = vpop.permute.xlu0 %1552
      %1556 = vset.pattern.permute.xlu0 0
      %1557 = vperm.xlu0 %1556, %v1445
      %v1558 = vpop.permute.xlu0 %1557
      %1561 = vset.pattern.permute.xlu0 0
      %1562 = vperm.xlu0 %1561, %v1446
      %v1563 = vpop.permute.xlu0 %1562
      %1566 = vset.pattern.permute.xlu0 0
      %1567 = vperm.xlu0 %1566, %v1447
      %v1568 = vpop.permute.xlu0 %1567
      %1571 = vset.pattern.permute.xlu0 0
      %1572 = vperm.xlu0 %1571, %v1448
      %v1573 = vpop.permute.xlu0 %1572
      %1576 = vset.pattern.permute.xlu0 0
      %1577 = vperm.xlu0 %1576, %v1449
      %v1578 = vpop.permute.xlu0 %1577
      %1581 = vset.pattern.permute.xlu0 0
      %1582 = vperm.xlu0 %1581, %v1450
      %v1583 = vpop.permute.xlu0 %1582
      %1586 = vset.pattern.permute.xlu0 0
      %1587 = vperm.xlu0 %1586, %v1451
      %v1588 = vpop.permute.xlu0 %1587
      %1591 = vset.pattern.permute.xlu0 0
      %1592 = vperm.xlu0 %1591, %v1452
      %v1593 = vpop.permute.xlu0 %1592
      %1596 = vset.pattern.permute.xlu0 0
      %1597 = vperm.xlu0 %1596, %v1453
      %v1598 = vpop.permute.xlu0 %1597
      %1601 = vset.pattern.permute.xlu0 0
      %1602 = vperm.xlu0 %1601, %v1454
      %v1603 = vpop.permute.xlu0 %1602
      %1606 = vset.pattern.permute.xlu0 0
      %1607 = vperm.xlu0 %1606, %v1455
      %v1608 = vpop.permute.xlu0 %1607
      %1611 = vset.pattern.permute.xlu0 0
      %1612 = vperm.xlu0 %1611, %v1456
      %v1613 = vpop.permute.xlu0 %1612
      %1616 = vset.pattern.permute.xlu0 0
      %1617 = vperm.xlu0 %1616, %v1457
      %v1618 = vpop.permute.xlu0 %1617
      %v1620 = vlaneseq
      %v1621 = vshrl.u32 %v1620, 7
      %v1622 = vsub.s32 2, %v1621
      %v1623 = vrot.slane %v1459, %v1622
      %v1624 = vmul.f32 %v1463, %v1623
      %v1625 = vmul.f32 %v1468, %v1623
      %v1626 = vmul.f32 %v1473, %v1623
      %v1627 = vmul.f32 %v1478, %v1623
      %v1628 = vmul.f32 %v1483, %v1623
      %v1629 = vmul.f32 %v1488, %v1623
      %v1630 = vmul.f32 %v1493, %v1623
      %v1631 = vmul.f32 %v1498, %v1623
      %v1632 = vmul.f32 %v1503, %v1623
      %v1633 = vmul.f32 %v1508, %v1623
      %v1634 = vmul.f32 %v1513, %v1623
      %v1635 = vmul.f32 %v1518, %v1623
      %v1636 = vmul.f32 %v1523, %v1623
      %v1637 = vmul.f32 %v1528, %v1623
      %v1638 = vmul.f32 %v1533, %v1623
      %v1639 = vmul.f32 %v1538, %v1623
      %v1640 = vmul.f32 %v1543, %v1623
      %v1641 = vmul.f32 %v1548, %v1623
      %v1642 = vmul.f32 %v1553, %v1623
      %v1643 = vmul.f32 %v1558, %v1623
      %v1644 = vmul.f32 %v1563, %v1623
      %v1645 = vmul.f32 %v1568, %v1623
      %v1646 = vmul.f32 %v1573, %v1623
      %v1647 = vmul.f32 %v1578, %v1623
      %v1648 = vmul.f32 %v1583, %v1623
      %v1649 = vmul.f32 %v1588, %v1623
      %v1650 = vmul.f32 %v1593, %v1623
      %v1651 = vmul.f32 %v1598, %v1623
      %v1652 = vmul.f32 %v1603, %v1623
      %v1653 = vmul.f32 %v1608, %v1623
      %v1654 = vmul.f32 %v1613, %v1623
      %v1655 = vmul.f32 %v1618, %v1623
      %v1656 = vadd.f32 %v975, %v1624
      %v1657 = vadd.f32 %v976, %v1625
      %v1658 = vadd.f32 %v977, %v1626
      %v1659 = vadd.f32 %v978, %v1627
      %v1660 = vadd.f32 %v979, %v1628
      %v1661 = vadd.f32 %v980, %v1629
      %v1662 = vadd.f32 %v981, %v1630
      %v1663 = vadd.f32 %v982, %v1631
      %v1664 = vadd.f32 %v983, %v1632
      %v1665 = vadd.f32 %v984, %v1633
      %v1666 = vadd.f32 %v985, %v1634
      %v1667 = vadd.f32 %v986, %v1635
      %v1668 = vadd.f32 %v987, %v1636
      %v1669 = vadd.f32 %v988, %v1637
      %v1670 = vadd.f32 %v989, %v1638
      %v1671 = vadd.f32 %v990, %v1639
      %v1672 = vadd.f32 %v991, %v1640
      %v1673 = vadd.f32 %v992, %v1641
      %v1674 = vadd.f32 %v993, %v1642
      %v1675 = vadd.f32 %v994, %v1643
      %v1676 = vadd.f32 %v995, %v1644
      %v1677 = vadd.f32 %v996, %v1645
      %v1678 = vadd.f32 %v997, %v1646
      %v1679 = vadd.f32 %v998, %v1647
      %v1680 = vadd.f32 %v999, %v1648
      %v1681 = vadd.f32 %v1000, %v1649
      %v1682 = vadd.f32 %v1001, %v1650
      %v1683 = vadd.f32 %v1002, %v1651
      %v1684 = vadd.f32 %v1003, %v1652
      %v1685 = vadd.f32 %v1004, %v1653
      %v1686 = vadd.f32 %v1005, %v1654
      %v1687 = vadd.f32 %v1006, %v1655
      %v1688 = vunpack.c.l.bf16 %v397
      %v1689 = vunpack.c.l.bf16 %v398
      %v1690 = vunpack.c.l.bf16 %v400
      %v1691 = vunpack.c.l.bf16 %v401
      %v1692 = vunpack.c.l.bf16 %v403
      %v1693 = vunpack.c.l.bf16 %v404
      %v1694 = vunpack.c.l.bf16 %v406
      %v1695 = vunpack.c.l.bf16 %v407
      %v1696 = vunpack.c.l.bf16 %v409
      %v1697 = vunpack.c.l.bf16 %v410
      %v1698 = vunpack.c.l.bf16 %v412
      %v1699 = vunpack.c.l.bf16 %v413
      %v1700 = vunpack.c.l.bf16 %v415
      %v1701 = vunpack.c.l.bf16 %v416
      %v1702 = vunpack.c.l.bf16 %v418
      %v1703 = vunpack.c.l.bf16 %v419
      %v1704 = vunpack.c.l.bf16 %v421
      %v1705 = vunpack.c.l.bf16 %v422
      %v1706 = vunpack.c.l.bf16 %v424
      %v1707 = vunpack.c.l.bf16 %v425
      %v1708 = vunpack.c.l.bf16 %v427
      %v1709 = vunpack.c.l.bf16 %v428
      %v1710 = vunpack.c.l.bf16 %v430
      %v1711 = vunpack.c.l.bf16 %v431
      %v1712 = vunpack.c.l.bf16 %v433
      %v1713 = vunpack.c.l.bf16 %v434
      %v1714 = vunpack.c.l.bf16 %v436
      %v1715 = vunpack.c.l.bf16 %v437
      %v1716 = vunpack.c.l.bf16 %v439
      %v1717 = vunpack.c.l.bf16 %v440
      %v1718 = vunpack.c.l.bf16 %v442
      %v1719 = vunpack.c.l.bf16 %v443
      %1721 = vset.pattern.permute.xlu0 0
      %1722 = vperm.xlu0 %1721, %v1688
      %v1723 = vpop.permute.xlu0 %1722
      %1726 = vset.pattern.permute.xlu0 0
      %1727 = vperm.xlu0 %1726, %v1689
      %v1728 = vpop.permute.xlu0 %1727
      %1731 = vset.pattern.permute.xlu0 0
      %1732 = vperm.xlu0 %1731, %v1690
      %v1733 = vpop.permute.xlu0 %1732
      %1736 = vset.pattern.permute.xlu0 0
      %1737 = vperm.xlu0 %1736, %v1691
      %v1738 = vpop.permute.xlu0 %1737
      %1741 = vset.pattern.permute.xlu0 0
      %1742 = vperm.xlu0 %1741, %v1692
      %v1743 = vpop.permute.xlu0 %1742
      %1746 = vset.pattern.permute.xlu0 0
      %1747 = vperm.xlu0 %1746, %v1693
      %v1748 = vpop.permute.xlu0 %1747
      %1751 = vset.pattern.permute.xlu0 0
      %1752 = vperm.xlu0 %1751, %v1694
      %v1753 = vpop.permute.xlu0 %1752
      %1756 = vset.pattern.permute.xlu0 0
      %1757 = vperm.xlu0 %1756, %v1695
      %v1758 = vpop.permute.xlu0 %1757
      %1761 = vset.pattern.permute.xlu0 0
      %1762 = vperm.xlu0 %1761, %v1696
      %v1763 = vpop.permute.xlu0 %1762
      %1766 = vset.pattern.permute.xlu0 0
      %1767 = vperm.xlu0 %1766, %v1697
      %v1768 = vpop.permute.xlu0 %1767
      %1771 = vset.pattern.permute.xlu0 0
      %1772 = vperm.xlu0 %1771, %v1698
      %v1773 = vpop.permute.xlu0 %1772
      %1776 = vset.pattern.permute.xlu0 0
      %1777 = vperm.xlu0 %1776, %v1699
      %v1778 = vpop.permute.xlu0 %1777
      %1781 = vset.pattern.permute.xlu0 0
      %1782 = vperm.xlu0 %1781, %v1700
      %v1783 = vpop.permute.xlu0 %1782
      %1786 = vset.pattern.permute.xlu0 0
      %1787 = vperm.xlu0 %1786, %v1701
      %v1788 = vpop.permute.xlu0 %1787
      %1791 = vset.pattern.permute.xlu0 0
      %1792 = vperm.xlu0 %1791, %v1702
      %v1793 = vpop.permute.xlu0 %1792
      %1796 = vset.pattern.permute.xlu0 0
      %1797 = vperm.xlu0 %1796, %v1703
      %v1798 = vpop.permute.xlu0 %1797
      %1801 = vset.pattern.permute.xlu0 0
      %1802 = vperm.xlu0 %1801, %v1704
      %v1803 = vpop.permute.xlu0 %1802
      %1806 = vset.pattern.permute.xlu0 0
      %1807 = vperm.xlu0 %1806, %v1705
      %v1808 = vpop.permute.xlu0 %1807
      %1811 = vset.pattern.permute.xlu0 0
      %1812 = vperm.xlu0 %1811, %v1706
      %v1813 = vpop.permute.xlu0 %1812
      %1816 = vset.pattern.permute.xlu0 0
      %1817 = vperm.xlu0 %1816, %v1707
      %v1818 = vpop.permute.xlu0 %1817
      %1821 = vset.pattern.permute.xlu0 0
      %1822 = vperm.xlu0 %1821, %v1708
      %v1823 = vpop.permute.xlu0 %1822
      %1826 = vset.pattern.permute.xlu0 0
      %1827 = vperm.xlu0 %1826, %v1709
      %v1828 = vpop.permute.xlu0 %1827
      %1831 = vset.pattern.permute.xlu0 0
      %1832 = vperm.xlu0 %1831, %v1710
      %v1833 = vpop.permute.xlu0 %1832
      %1836 = vset.pattern.permute.xlu0 0
      %1837 = vperm.xlu0 %1836, %v1711
      %v1838 = vpop.permute.xlu0 %1837
      %1841 = vset.pattern.permute.xlu0 0
      %1842 = vperm.xlu0 %1841, %v1712
      %v1843 = vpop.permute.xlu0 %1842
      %1846 = vset.pattern.permute.xlu0 0
      %1847 = vperm.xlu0 %1846, %v1713
      %v1848 = vpop.permute.xlu0 %1847
      %1851 = vset.pattern.permute.xlu0 0
      %1852 = vperm.xlu0 %1851, %v1714
      %v1853 = vpop.permute.xlu0 %1852
      %1856 = vset.pattern.permute.xlu0 0
      %1857 = vperm.xlu0 %1856, %v1715
      %v1858 = vpop.permute.xlu0 %1857
      %1861 = vset.pattern.permute.xlu0 0
      %1862 = vperm.xlu0 %1861, %v1716
      %v1863 = vpop.permute.xlu0 %1862
      %1866 = vset.pattern.permute.xlu0 0
      %1867 = vperm.xlu0 %1866, %v1717
      %v1868 = vpop.permute.xlu0 %1867
      %1871 = vset.pattern.permute.xlu0 0
      %1872 = vperm.xlu0 %1871, %v1718
      %v1873 = vpop.permute.xlu0 %1872
      %1876 = vset.pattern.permute.xlu0 0
      %1877 = vperm.xlu0 %1876, %v1719
      %v1878 = vpop.permute.xlu0 %1877
      %v1880 = vlaneseq
      %v1881 = vshrl.u32 %v1880, 7
      %v1882 = vsub.s32 3, %v1881
      %v1883 = vrot.slane %v1459, %v1882
      %v1884 = vmul.f32 %v1723, %v1883
      %v1885 = vmul.f32 %v1728, %v1883
      %v1886 = vmul.f32 %v1733, %v1883
      %v1887 = vmul.f32 %v1738, %v1883
      %v1888 = vmul.f32 %v1743, %v1883
      %v1889 = vmul.f32 %v1748, %v1883
      %v1890 = vmul.f32 %v1753, %v1883
      %v1891 = vmul.f32 %v1758, %v1883
      %v1892 = vmul.f32 %v1763, %v1883
      %v1893 = vmul.f32 %v1768, %v1883
      %v1894 = vmul.f32 %v1773, %v1883
      %v1895 = vmul.f32 %v1778, %v1883
      %v1896 = vmul.f32 %v1783, %v1883
      %v1897 = vmul.f32 %v1788, %v1883
      %v1898 = vmul.f32 %v1793, %v1883
      %v1899 = vmul.f32 %v1798, %v1883
      %v1900 = vmul.f32 %v1803, %v1883
      %v1901 = vmul.f32 %v1808, %v1883
      %v1902 = vmul.f32 %v1813, %v1883
      %v1903 = vmul.f32 %v1818, %v1883
      %v1904 = vmul.f32 %v1823, %v1883
      %v1905 = vmul.f32 %v1828, %v1883
      %v1906 = vmul.f32 %v1833, %v1883
      %v1907 = vmul.f32 %v1838, %v1883
      %v1908 = vmul.f32 %v1843, %v1883
      %v1909 = vmul.f32 %v1848, %v1883
      %v1910 = vmul.f32 %v1853, %v1883
      %v1911 = vmul.f32 %v1858, %v1883
      %v1912 = vmul.f32 %v1863, %v1883
      %v1913 = vmul.f32 %v1868, %v1883
      %v1914 = vmul.f32 %v1873, %v1883
      %v1915 = vmul.f32 %v1878, %v1883
      %v1916 = vadd.f32 %v1656, %v1884
      %v1917 = vadd.f32 %v1657, %v1885
      %v1918 = vadd.f32 %v1658, %v1886
      %v1919 = vadd.f32 %v1659, %v1887
      %v1920 = vadd.f32 %v1660, %v1888
      %v1921 = vadd.f32 %v1661, %v1889
      %v1922 = vadd.f32 %v1662, %v1890
      %v1923 = vadd.f32 %v1663, %v1891
      %v1924 = vadd.f32 %v1664, %v1892
      %v1925 = vadd.f32 %v1665, %v1893
      %v1926 = vadd.f32 %v1666, %v1894
      %v1927 = vadd.f32 %v1667, %v1895
      %v1928 = vadd.f32 %v1668, %v1896
      %v1929 = vadd.f32 %v1669, %v1897
      %v1930 = vadd.f32 %v1670, %v1898
      %v1931 = vadd.f32 %v1671, %v1899
      %v1932 = vadd.f32 %v1672, %v1900
      %v1933 = vadd.f32 %v1673, %v1901
      %v1934 = vadd.f32 %v1674, %v1902
      %v1935 = vadd.f32 %v1675, %v1903
      %v1936 = vadd.f32 %v1676, %v1904
      %v1937 = vadd.f32 %v1677, %v1905
      %v1938 = vadd.f32 %v1678, %v1906
      %v1939 = vadd.f32 %v1679, %v1907
      %v1940 = vadd.f32 %v1680, %v1908
      %v1941 = vadd.f32 %v1681, %v1909
      %v1942 = vadd.f32 %v1682, %v1910
      %v1943 = vadd.f32 %v1683, %v1911
      %v1944 = vadd.f32 %v1684, %v1912
      %v1945 = vadd.f32 %v1685, %v1913
      %v1946 = vadd.f32 %v1686, %v1914
      %v1947 = vadd.f32 %v1687, %v1915
      %v1948 = vunpack.c.l.bf16 %v445
      %v1949 = vunpack.c.l.bf16 %v446
      %v1950 = vunpack.c.l.bf16 %v447
      %v1951 = vunpack.c.l.bf16 %v448
      %v1952 = vunpack.c.l.bf16 %v449
      %v1953 = vunpack.c.l.bf16 %v450
      %v1954 = vunpack.c.l.bf16 %v451
      %v1955 = vunpack.c.l.bf16 %v452
      %v1956 = vunpack.c.l.bf16 %v453
      %v1957 = vunpack.c.l.bf16 %v454
      %v1958 = vunpack.c.l.bf16 %v455
      %v1959 = vunpack.c.l.bf16 %v456
      %v1960 = vunpack.c.l.bf16 %v457
      %v1961 = vunpack.c.l.bf16 %v458
      %v1962 = vunpack.c.l.bf16 %v459
      %v1963 = vunpack.c.l.bf16 %v460
      %v1964 = vunpack.c.l.bf16 %v461
      %v1965 = vunpack.c.l.bf16 %v462
      %v1966 = vunpack.c.l.bf16 %v463
      %v1967 = vunpack.c.l.bf16 %v464
      %v1968 = vunpack.c.l.bf16 %v465
      %v1969 = vunpack.c.l.bf16 %v466
      %v1970 = vunpack.c.l.bf16 %v467
      %v1971 = vunpack.c.l.bf16 %v468
      %v1972 = vunpack.c.l.bf16 %v469
      %v1973 = vunpack.c.l.bf16 %v470
      %v1974 = vunpack.c.l.bf16 %v471
      %v1975 = vunpack.c.l.bf16 %v472
      %v1976 = vunpack.c.l.bf16 %v473
      %v1977 = vunpack.c.l.bf16 %v474
      %v1978 = vunpack.c.l.bf16 %v475
      %v1979 = vunpack.c.l.bf16 %v476
      %v1980 = vld [vmem:[%s4] sm:$0x4]
      %v1981 = vunpack.c.l.bf16 %v1980
      %1983 = vset.pattern.permute.xlu0 0
      %1984 = vperm.xlu0 %1983, %v1948
      %v1985 = vpop.permute.xlu0 %1984
      %1988 = vset.pattern.permute.xlu0 0
      %1989 = vperm.xlu0 %1988, %v1949
      %v1990 = vpop.permute.xlu0 %1989
      %1993 = vset.pattern.permute.xlu0 0
      %1994 = vperm.xlu0 %1993, %v1950
      %v1995 = vpop.permute.xlu0 %1994
      %1998 = vset.pattern.permute.xlu0 0
      %1999 = vperm.xlu0 %1998, %v1951
      %v2000 = vpop.permute.xlu0 %1999
      %2003 = vset.pattern.permute.xlu0 0
      %2004 = vperm.xlu0 %2003, %v1952
      %v2005 = vpop.permute.xlu0 %2004
      %2008 = vset.pattern.permute.xlu0 0
      %2009 = vperm.xlu0 %2008, %v1953
      %v2010 = vpop.permute.xlu0 %2009
      %2013 = vset.pattern.permute.xlu0 0
      %2014 = vperm.xlu0 %2013, %v1954
      %v2015 = vpop.permute.xlu0 %2014
      %2018 = vset.pattern.permute.xlu0 0
      %2019 = vperm.xlu0 %2018, %v1955
      %v2020 = vpop.permute.xlu0 %2019
      %2023 = vset.pattern.permute.xlu0 0
      %2024 = vperm.xlu0 %2023, %v1956
      %v2025 = vpop.permute.xlu0 %2024
      %2028 = vset.pattern.permute.xlu0 0
      %2029 = vperm.xlu0 %2028, %v1957
      %v2030 = vpop.permute.xlu0 %2029
      %2033 = vset.pattern.permute.xlu0 0
      %2034 = vperm.xlu0 %2033, %v1958
      %v2035 = vpop.permute.xlu0 %2034
      %2038 = vset.pattern.permute.xlu0 0
      %2039 = vperm.xlu0 %2038, %v1959
      %v2040 = vpop.permute.xlu0 %2039
      %2043 = vset.pattern.permute.xlu0 0
      %2044 = vperm.xlu0 %2043, %v1960
      %v2045 = vpop.permute.xlu0 %2044
      %2048 = vset.pattern.permute.xlu0 0
      %2049 = vperm.xlu0 %2048, %v1961
      %v2050 = vpop.permute.xlu0 %2049
      %2053 = vset.pattern.permute.xlu0 0
      %2054 = vperm.xlu0 %2053, %v1962
      %v2055 = vpop.permute.xlu0 %2054
      %2058 = vset.pattern.permute.xlu0 0
      %2059 = vperm.xlu0 %2058, %v1963
      %v2060 = vpop.permute.xlu0 %2059
      %2063 = vset.pattern.permute.xlu0 0
      %2064 = vperm.xlu0 %2063, %v1964
      %v2065 = vpop.permute.xlu0 %2064
      %2068 = vset.pattern.permute.xlu0 0
      %2069 = vperm.xlu0 %2068, %v1965
      %v2070 = vpop.permute.xlu0 %2069
      %2073 = vset.pattern.permute.xlu0 0
      %2074 = vperm.xlu0 %2073, %v1966
      %v2075 = vpop.permute.xlu0 %2074
      %2078 = vset.pattern.permute.xlu0 0
      %2079 = vperm.xlu0 %2078, %v1967
      %v2080 = vpop.permute.xlu0 %2079
      %2083 = vset.pattern.permute.xlu0 0
      %2084 = vperm.xlu0 %2083, %v1968
      %v2085 = vpop.permute.xlu0 %2084
      %2088 = vset.pattern.permute.xlu0 0
      %2089 = vperm.xlu0 %2088, %v1969
      %v2090 = vpop.permute.xlu0 %2089
      %2093 = vset.pattern.permute.xlu0 0
      %2094 = vperm.xlu0 %2093, %v1970
      %v2095 = vpop.permute.xlu0 %2094
      %2098 = vset.pattern.permute.xlu0 0
      %2099 = vperm.xlu0 %2098, %v1971
      %v2100 = vpop.permute.xlu0 %2099
      %2103 = vset.pattern.permute.xlu0 0
      %2104 = vperm.xlu0 %2103, %v1972
      %v2105 = vpop.permute.xlu0 %2104
      %2108 = vset.pattern.permute.xlu0 0
      %2109 = vperm.xlu0 %2108, %v1973
      %v2110 = vpop.permute.xlu0 %2109
      %2113 = vset.pattern.permute.xlu0 0
      %2114 = vperm.xlu0 %2113, %v1974
      %v2115 = vpop.permute.xlu0 %2114
      %2118 = vset.pattern.permute.xlu0 0
      %2119 = vperm.xlu0 %2118, %v1975
      %v2120 = vpop.permute.xlu0 %2119
      %2123 = vset.pattern.permute.xlu0 0
      %2124 = vperm.xlu0 %2123, %v1976
      %v2125 = vpop.permute.xlu0 %2124
      %2128 = vset.pattern.permute.xlu0 0
      %2129 = vperm.xlu0 %2128, %v1977
      %v2130 = vpop.permute.xlu0 %2129
      %2133 = vset.pattern.permute.xlu0 0
      %2134 = vperm.xlu0 %2133, %v1978
      %v2135 = vpop.permute.xlu0 %2134
      %2138 = vset.pattern.permute.xlu0 0
      %2139 = vperm.xlu0 %2138, %v1979
      %v2140 = vpop.permute.xlu0 %2139
      %v2142 = vlaneseq
      %v2143 = vshrl.u32 %v2142, 7
      %v2144 = vsub.s32 4, %v2143
      %v2145 = vrot.slane %v1981, %v2144
      %v2146 = vmul.f32 %v1985, %v2145
      %v2147 = vmul.f32 %v1990, %v2145
      %v2148 = vmul.f32 %v1995, %v2145
      %v2149 = vmul.f32 %v2000, %v2145
      %v2150 = vmul.f32 %v2005, %v2145
      %v2151 = vmul.f32 %v2010, %v2145
      %v2152 = vmul.f32 %v2015, %v2145
      %v2153 = vmul.f32 %v2020, %v2145
      %v2154 = vmul.f32 %v2025, %v2145
      %v2155 = vmul.f32 %v2030, %v2145
      %v2156 = vmul.f32 %v2035, %v2145
      %v2157 = vmul.f32 %v2040, %v2145
      %v2158 = vmul.f32 %v2045, %v2145
      %v2159 = vmul.f32 %v2050, %v2145
      %v2160 = vmul.f32 %v2055, %v2145
      %v2161 = vmul.f32 %v2060, %v2145
      %v2162 = vmul.f32 %v2065, %v2145
      %v2163 = vmul.f32 %v2070, %v2145
      %v2164 = vmul.f32 %v2075, %v2145
      %v2165 = vmul.f32 %v2080, %v2145
      %v2166 = vmul.f32 %v2085, %v2145
      %v2167 = vmul.f32 %v2090, %v2145
      %v2168 = vmul.f32 %v2095, %v2145
      %v2169 = vmul.f32 %v2100, %v2145
      %v2170 = vmul.f32 %v2105, %v2145
      %v2171 = vmul.f32 %v2110, %v2145
      %v2172 = vmul.f32 %v2115, %v2145
      %v2173 = vmul.f32 %v2120, %v2145
      %v2174 = vmul.f32 %v2125, %v2145
      %v2175 = vmul.f32 %v2130, %v2145
      %v2176 = vmul.f32 %v2135, %v2145
      %v2177 = vmul.f32 %v2140, %v2145
      %v2178 = vadd.f32 %v1916, %v2146
      %v2179 = vadd.f32 %v1917, %v2147
      %v2180 = vadd.f32 %v1918, %v2148
      %v2181 = vadd.f32 %v1919, %v2149
      %v2182 = vadd.f32 %v1920, %v2150
      %v2183 = vadd.f32 %v1921, %v2151
      %v2184 = vadd.f32 %v1922, %v2152
      %v2185 = vadd.f32 %v1923, %v2153
      %v2186 = vadd.f32 %v1924, %v2154
      %v2187 = vadd.f32 %v1925, %v2155
      %v2188 = vadd.f32 %v1926, %v2156
      %v2189 = vadd.f32 %v1927, %v2157
      %v2190 = vadd.f32 %v1928, %v2158
      %v2191 = vadd.f32 %v1929, %v2159
      %v2192 = vadd.f32 %v1930, %v2160
      %v2193 = vadd.f32 %v1931, %v2161
      %v2194 = vadd.f32 %v1932, %v2162
      %v2195 = vadd.f32 %v1933, %v2163
      %v2196 = vadd.f32 %v1934, %v2164
      %v2197 = vadd.f32 %v1935, %v2165
      %v2198 = vadd.f32 %v1936, %v2166
      %v2199 = vadd.f32 %v1937, %v2167
      %v2200 = vadd.f32 %v1938, %v2168
      %v2201 = vadd.f32 %v1939, %v2169
      %v2202 = vadd.f32 %v1940, %v2170
      %v2203 = vadd.f32 %v1941, %v2171
      %v2204 = vadd.f32 %v1942, %v2172
      %v2205 = vadd.f32 %v1943, %v2173
      %v2206 = vadd.f32 %v1944, %v2174
      %v2207 = vadd.f32 %v1945, %v2175
      %v2208 = vadd.f32 %v1946, %v2176
      %v2209 = vadd.f32 %v1947, %v2177
      %v2211 = vshrl.u32 %v397, 16
      %v2213 = vrot.slane %v2211, 4
      %v2214 = vshll.u32 %v397, 16
      %v2216 = vrot.slane %v2214, 5
      %v2217 = vor.u32 %v2213, %v2216
      %v2218 = vrot.slane %v2217, 4
      %v2220 = vshll.u32 %v398, 16
      %v2222 = vrot.slane %v2220, 5
      %v2223 = vsel %vm1009, %v2218, %v2222
      %v2224 = vshrl.u32 %v398, 16
      %v2226 = vrot.slane %v2224, 4
      %v2227 = vor.u32 %v2226, %v2222
      %v2228 = vrot.slane %v2227, 4
      %v2230 = vshll.u32 %v399, 16
      %v2232 = vrot.slane %v2230, 5
      %v2233 = vsel %vm1009, %v2228, %v2232
      %v2235 = vshrl.u32 %v400, 16
      %v2237 = vrot.slane %v2235, 4
      %v2238 = vshll.u32 %v400, 16
      %v2240 = vrot.slane %v2238, 5
      %v2241 = vor.u32 %v2237, %v2240
      %v2242 = vrot.slane %v2241, 4
      %v2244 = vshll.u32 %v401, 16
      %v2246 = vrot.slane %v2244, 5
      %v2247 = vsel %vm1009, %v2242, %v2246
      %v2248 = vshrl.u32 %v401, 16
      %v2250 = vrot.slane %v2248, 4
      %v2251 = vor.u32 %v2250, %v2246
      %v2252 = vrot.slane %v2251, 4
      %v2254 = vshll.u32 %v402, 16
      %v2256 = vrot.slane %v2254, 5
      %v2257 = vsel %vm1009, %v2252, %v2256
      %v2259 = vshrl.u32 %v403, 16
      %v2261 = vrot.slane %v2259, 4
      %v2262 = vshll.u32 %v403, 16
      %v2264 = vrot.slane %v2262, 5
      %v2265 = vor.u32 %v2261, %v2264
      %v2266 = vrot.slane %v2265, 4
      %v2268 = vshll.u32 %v404, 16
      %v2270 = vrot.slane %v2268, 5
      %v2271 = vsel %vm1009, %v2266, %v2270
      %v2272 = vshrl.u32 %v404, 16
      %v2274 = vrot.slane %v2272, 4
      %v2275 = vor.u32 %v2274, %v2270
      %v2276 = vrot.slane %v2275, 4
      %v2278 = vshll.u32 %v405, 16
      %v2280 = vrot.slane %v2278, 5
      %v2281 = vsel %vm1009, %v2276, %v2280
      %v2283 = vshrl.u32 %v406, 16
      %v2285 = vrot.slane %v2283, 4
      %v2286 = vshll.u32 %v406, 16
      %v2288 = vrot.slane %v2286, 5
      %v2289 = vor.u32 %v2285, %v2288
      %v2290 = vrot.slane %v2289, 4
      %v2292 = vshll.u32 %v407, 16
      %v2294 = vrot.slane %v2292, 5
      %v2295 = vsel %vm1009, %v2290, %v2294
      %v2296 = vshrl.u32 %v407, 16
      %v2298 = vrot.slane %v2296, 4
      %v2299 = vor.u32 %v2298, %v2294
      %v2300 = vrot.slane %v2299, 4
      %v2302 = vshll.u32 %v408, 16
      %v2304 = vrot.slane %v2302, 5
      %v2305 = vsel %vm1009, %v2300, %v2304
      %v2307 = vshrl.u32 %v409, 16
      %v2309 = vrot.slane %v2307, 4
      %v2310 = vshll.u32 %v409, 16
      %v2312 = vrot.slane %v2310, 5
      %v2313 = vor.u32 %v2309, %v2312
      %v2314 = vrot.slane %v2313, 4
      %v2316 = vshll.u32 %v410, 16
      %v2318 = vrot.slane %v2316, 5
      %v2319 = vsel %vm1009, %v2314, %v2318
      %v2320 = vshrl.u32 %v410, 16
      %v2322 = vrot.slane %v2320, 4
      %v2323 = vor.u32 %v2322, %v2318
      %v2324 = vrot.slane %v2323, 4
      %v2326 = vshll.u32 %v411, 16
      %v2328 = vrot.slane %v2326, 5
      %v2329 = vsel %vm1009, %v2324, %v2328
      %v2331 = vshrl.u32 %v412, 16
      %v2333 = vrot.slane %v2331, 4
      %v2334 = vshll.u32 %v412, 16
      %v2336 = vrot.slane %v2334, 5
      %v2337 = vor.u32 %v2333, %v2336
      %v2338 = vrot.slane %v2337, 4
      %v2340 = vshll.u32 %v413, 16
      %v2342 = vrot.slane %v2340, 5
      %v2343 = vsel %vm1009, %v2338, %v2342
      %v2344 = vshrl.u32 %v413, 16
      %v2346 = vrot.slane %v2344, 4
      %v2347 = vor.u32 %v2346, %v2342
      %v2348 = vrot.slane %v2347, 4
      %v2350 = vshll.u32 %v414, 16
      %v2352 = vrot.slane %v2350, 5
      %v2353 = vsel %vm1009, %v2348, %v2352
      %v2355 = vshrl.u32 %v415, 16
      %v2357 = vrot.slane %v2355, 4
      %v2358 = vshll.u32 %v415, 16
      %v2360 = vrot.slane %v2358, 5
      %v2361 = vor.u32 %v2357, %v2360
      %v2362 = vrot.slane %v2361, 4
      %v2364 = vshll.u32 %v416, 16
      %v2366 = vrot.slane %v2364, 5
      %v2367 = vsel %vm1009, %v2362, %v2366
      %v2368 = vshrl.u32 %v416, 16
      %v2370 = vrot.slane %v2368, 4
      %v2371 = vor.u32 %v2370, %v2366
      %v2372 = vrot.slane %v2371, 4
      %v2374 = vshll.u32 %v417, 16
      %v2376 = vrot.slane %v2374, 5
      %v2377 = vsel %vm1009, %v2372, %v2376
      %v2379 = vshrl.u32 %v418, 16
      %v2381 = vrot.slane %v2379, 4
      %v2382 = vshll.u32 %v418, 16
      %v2384 = vrot.slane %v2382, 5
      %v2385 = vor.u32 %v2381, %v2384
      %v2386 = vrot.slane %v2385, 4
      %v2388 = vshll.u32 %v419, 16
      %v2390 = vrot.slane %v2388, 5
      %v2391 = vsel %vm1009, %v2386, %v2390
      %v2392 = vshrl.u32 %v419, 16
      %v2394 = vrot.slane %v2392, 4
      %v2395 = vor.u32 %v2394, %v2390
      %v2396 = vrot.slane %v2395, 4
      %v2398 = vshll.u32 %v420, 16
      %v2400 = vrot.slane %v2398, 5
      %v2401 = vsel %vm1009, %v2396, %v2400
      %v2403 = vshrl.u32 %v421, 16
      %v2405 = vrot.slane %v2403, 4
      %v2406 = vshll.u32 %v421, 16
      %v2408 = vrot.slane %v2406, 5
      %v2409 = vor.u32 %v2405, %v2408
      %v2410 = vrot.slane %v2409, 4
      %v2412 = vshll.u32 %v422, 16
      %v2414 = vrot.slane %v2412, 5
      %v2415 = vsel %vm1009, %v2410, %v2414
      %v2416 = vshrl.u32 %v422, 16
      %v2418 = vrot.slane %v2416, 4
      %v2419 = vor.u32 %v2418, %v2414
      %v2420 = vrot.slane %v2419, 4
      %v2422 = vshll.u32 %v423, 16
      %v2424 = vrot.slane %v2422, 5
      %v2425 = vsel %vm1009, %v2420, %v2424
      %v2427 = vshrl.u32 %v424, 16
      %v2429 = vrot.slane %v2427, 4
      %v2430 = vshll.u32 %v424, 16
      %v2432 = vrot.slane %v2430, 5
      %v2433 = vor.u32 %v2429, %v2432
      %v2434 = vrot.slane %v2433, 4
      %v2436 = vshll.u32 %v425, 16
      %v2438 = vrot.slane %v2436, 5
      %v2439 = vsel %vm1009, %v2434, %v2438
      %v2440 = vshrl.u32 %v425, 16
      %v2442 = vrot.slane %v2440, 4
      %v2443 = vor.u32 %v2442, %v2438
      %v2444 = vrot.slane %v2443, 4
      %v2446 = vshll.u32 %v426, 16
      %v2448 = vrot.slane %v2446, 5
      %v2449 = vsel %vm1009, %v2444, %v2448
      %v2451 = vshrl.u32 %v427, 16
      %v2453 = vrot.slane %v2451, 4
      %v2454 = vshll.u32 %v427, 16
      %v2456 = vrot.slane %v2454, 5
      %v2457 = vor.u32 %v2453, %v2456
      %v2458 = vrot.slane %v2457, 4
      %v2460 = vshll.u32 %v428, 16
      %v2462 = vrot.slane %v2460, 5
      %v2463 = vsel %vm1009, %v2458, %v2462
      %v2464 = vshrl.u32 %v428, 16
      %v2466 = vrot.slane %v2464, 4
      %v2467 = vor.u32 %v2466, %v2462
      %v2468 = vrot.slane %v2467, 4
      %v2470 = vshll.u32 %v429, 16
      %v2472 = vrot.slane %v2470, 5
      %v2473 = vsel %vm1009, %v2468, %v2472
      %v2475 = vshrl.u32 %v430, 16
      %v2477 = vrot.slane %v2475, 4
      %v2478 = vshll.u32 %v430, 16
      %v2480 = vrot.slane %v2478, 5
      %v2481 = vor.u32 %v2477, %v2480
      %v2482 = vrot.slane %v2481, 4
      %v2484 = vshll.u32 %v431, 16
      %v2486 = vrot.slane %v2484, 5
      %v2487 = vsel %vm1009, %v2482, %v2486
      %v2488 = vshrl.u32 %v431, 16
      %v2490 = vrot.slane %v2488, 4
      %v2491 = vor.u32 %v2490, %v2486
      %v2492 = vrot.slane %v2491, 4
      %v2494 = vshll.u32 %v432, 16
      %v2496 = vrot.slane %v2494, 5
      %v2497 = vsel %vm1009, %v2492, %v2496
      %v2499 = vshrl.u32 %v433, 16
      %v2501 = vrot.slane %v2499, 4
      %v2502 = vshll.u32 %v433, 16
      %v2504 = vrot.slane %v2502, 5
      %v2505 = vor.u32 %v2501, %v2504
      %v2506 = vrot.slane %v2505, 4
      %v2508 = vshll.u32 %v434, 16
      %v2510 = vrot.slane %v2508, 5
      %v2511 = vsel %vm1009, %v2506, %v2510
      %v2512 = vshrl.u32 %v434, 16
      %v2514 = vrot.slane %v2512, 4
      %v2515 = vor.u32 %v2514, %v2510
      %v2516 = vrot.slane %v2515, 4
      %v2518 = vshll.u32 %v435, 16
      %v2520 = vrot.slane %v2518, 5
      %v2521 = vsel %vm1009, %v2516, %v2520
      %v2523 = vshrl.u32 %v436, 16
      %v2525 = vrot.slane %v2523, 4
      %v2526 = vshll.u32 %v436, 16
      %v2528 = vrot.slane %v2526, 5
      %v2529 = vor.u32 %v2525, %v2528
      %v2530 = vrot.slane %v2529, 4
      %v2532 = vshll.u32 %v437, 16
      %v2534 = vrot.slane %v2532, 5
      %v2535 = vsel %vm1009, %v2530, %v2534
      %v2536 = vshrl.u32 %v437, 16
      %v2538 = vrot.slane %v2536, 4
      %v2539 = vor.u32 %v2538, %v2534
      %v2540 = vrot.slane %v2539, 4
      %v2542 = vshll.u32 %v438, 16
      %v2544 = vrot.slane %v2542, 5
      %v2545 = vsel %vm1009, %v2540, %v2544
      %v2547 = vshrl.u32 %v439, 16
      %v2549 = vrot.slane %v2547, 4
      %v2550 = vshll.u32 %v439, 16
      %v2552 = vrot.slane %v2550, 5
      %v2553 = vor.u32 %v2549, %v2552
      %v2554 = vrot.slane %v2553, 4
      %v2556 = vshll.u32 %v440, 16
      %v2558 = vrot.slane %v2556, 5
      %v2559 = vsel %vm1009, %v2554, %v2558
      %v2560 = vshrl.u32 %v440, 16
      %v2562 = vrot.slane %v2560, 4
      %v2563 = vor.u32 %v2562, %v2558
      %v2564 = vrot.slane %v2563, 4
      %v2566 = vshll.u32 %v441, 16
      %v2568 = vrot.slane %v2566, 5
      %v2569 = vsel %vm1009, %v2564, %v2568
      %v2571 = vshrl.u32 %v442, 16
      %v2573 = vrot.slane %v2571, 4
      %v2574 = vshll.u32 %v442, 16
      %v2576 = vrot.slane %v2574, 5
      %v2577 = vor.u32 %v2573, %v2576
      %v2578 = vrot.slane %v2577, 4
      %v2580 = vshll.u32 %v443, 16
      %v2582 = vrot.slane %v2580, 5
      %v2583 = vsel %vm1009, %v2578, %v2582
      %v2584 = vshrl.u32 %v443, 16
      %v2586 = vrot.slane %v2584, 4
      %v2587 = vor.u32 %v2586, %v2582
      %v2588 = vrot.slane %v2587, 4
      %v2590 = vshll.u32 %v444, 16
      %v2592 = vrot.slane %v2590, 5
      %v2593 = vsel %vm1009, %v2588, %v2592
      %v2626 = vunpack.c.l.bf16 %v2223
      %v2627 = vunpack.c.l.bf16 %v2233
      %v2628 = vunpack.c.l.bf16 %v2247
      %v2629 = vunpack.c.l.bf16 %v2257
      %v2630 = vunpack.c.l.bf16 %v2271
      %v2631 = vunpack.c.l.bf16 %v2281
      %v2632 = vunpack.c.l.bf16 %v2295
      %v2633 = vunpack.c.l.bf16 %v2305
      %v2634 = vunpack.c.l.bf16 %v2319
      %v2635 = vunpack.c.l.bf16 %v2329
      %v2636 = vunpack.c.l.bf16 %v2343
      %v2637 = vunpack.c.l.bf16 %v2353
      %v2638 = vunpack.c.l.bf16 %v2367
      %v2639 = vunpack.c.l.bf16 %v2377
      %v2640 = vunpack.c.l.bf16 %v2391
      %v2641 = vunpack.c.l.bf16 %v2401
      %v2642 = vunpack.c.l.bf16 %v2415
      %v2643 = vunpack.c.l.bf16 %v2425
      %v2644 = vunpack.c.l.bf16 %v2439
      %v2645 = vunpack.c.l.bf16 %v2449
      %v2646 = vunpack.c.l.bf16 %v2463
      %v2647 = vunpack.c.l.bf16 %v2473
      %v2648 = vunpack.c.l.bf16 %v2487
      %v2649 = vunpack.c.l.bf16 %v2497
      %v2650 = vunpack.c.l.bf16 %v2511
      %v2651 = vunpack.c.l.bf16 %v2521
      %v2652 = vunpack.c.l.bf16 %v2535
      %v2653 = vunpack.c.l.bf16 %v2545
      %v2654 = vunpack.c.l.bf16 %v2559
      %v2655 = vunpack.c.l.bf16 %v2569
      %v2656 = vunpack.c.l.bf16 %v2583
      %v2657 = vunpack.c.l.bf16 %v2593
      %2659 = vset.pattern.permute.xlu0 0
      %2660 = vperm.xlu0 %2659, %v2626
      %v2661 = vpop.permute.xlu0 %2660
      %2664 = vset.pattern.permute.xlu0 0
      %2665 = vperm.xlu0 %2664, %v2627
      %v2666 = vpop.permute.xlu0 %2665
      %2669 = vset.pattern.permute.xlu0 0
      %2670 = vperm.xlu0 %2669, %v2628
      %v2671 = vpop.permute.xlu0 %2670
      %2674 = vset.pattern.permute.xlu0 0
      %2675 = vperm.xlu0 %2674, %v2629
      %v2676 = vpop.permute.xlu0 %2675
      %2679 = vset.pattern.permute.xlu0 0
      %2680 = vperm.xlu0 %2679, %v2630
      %v2681 = vpop.permute.xlu0 %2680
      %2684 = vset.pattern.permute.xlu0 0
      %2685 = vperm.xlu0 %2684, %v2631
      %v2686 = vpop.permute.xlu0 %2685
      %2689 = vset.pattern.permute.xlu0 0
      %2690 = vperm.xlu0 %2689, %v2632
      %v2691 = vpop.permute.xlu0 %2690
      %2694 = vset.pattern.permute.xlu0 0
      %2695 = vperm.xlu0 %2694, %v2633
      %v2696 = vpop.permute.xlu0 %2695
      %2699 = vset.pattern.permute.xlu0 0
      %2700 = vperm.xlu0 %2699, %v2634
      %v2701 = vpop.permute.xlu0 %2700
      %2704 = vset.pattern.permute.xlu0 0
      %2705 = vperm.xlu0 %2704, %v2635
      %v2706 = vpop.permute.xlu0 %2705
      %2709 = vset.pattern.permute.xlu0 0
      %2710 = vperm.xlu0 %2709, %v2636
      %v2711 = vpop.permute.xlu0 %2710
      %2714 = vset.pattern.permute.xlu0 0
      %2715 = vperm.xlu0 %2714, %v2637
      %v2716 = vpop.permute.xlu0 %2715
      %2719 = vset.pattern.permute.xlu0 0
      %2720 = vperm.xlu0 %2719, %v2638
      %v2721 = vpop.permute.xlu0 %2720
      %2724 = vset.pattern.permute.xlu0 0
      %2725 = vperm.xlu0 %2724, %v2639
      %v2726 = vpop.permute.xlu0 %2725
      %2729 = vset.pattern.permute.xlu0 0
      %2730 = vperm.xlu0 %2729, %v2640
      %v2731 = vpop.permute.xlu0 %2730
      %2734 = vset.pattern.permute.xlu0 0
      %2735 = vperm.xlu0 %2734, %v2641
      %v2736 = vpop.permute.xlu0 %2735
      %2739 = vset.pattern.permute.xlu0 0
      %2740 = vperm.xlu0 %2739, %v2642
      %v2741 = vpop.permute.xlu0 %2740
      %2744 = vset.pattern.permute.xlu0 0
      %2745 = vperm.xlu0 %2744, %v2643
      %v2746 = vpop.permute.xlu0 %2745
      %2749 = vset.pattern.permute.xlu0 0
      %2750 = vperm.xlu0 %2749, %v2644
      %v2751 = vpop.permute.xlu0 %2750
      %2754 = vset.pattern.permute.xlu0 0
      %2755 = vperm.xlu0 %2754, %v2645
      %v2756 = vpop.permute.xlu0 %2755
      %2759 = vset.pattern.permute.xlu0 0
      %2760 = vperm.xlu0 %2759, %v2646
      %v2761 = vpop.permute.xlu0 %2760
      %2764 = vset.pattern.permute.xlu0 0
      %2765 = vperm.xlu0 %2764, %v2647
      %v2766 = vpop.permute.xlu0 %2765
      %2769 = vset.pattern.permute.xlu0 0
      %2770 = vperm.xlu0 %2769, %v2648
      %v2771 = vpop.permute.xlu0 %2770
      %2774 = vset.pattern.permute.xlu0 0
      %2775 = vperm.xlu0 %2774, %v2649
      %v2776 = vpop.permute.xlu0 %2775
      %2779 = vset.pattern.permute.xlu0 0
      %2780 = vperm.xlu0 %2779, %v2650
      %v2781 = vpop.permute.xlu0 %2780
      %2784 = vset.pattern.permute.xlu0 0
      %2785 = vperm.xlu0 %2784, %v2651
      %v2786 = vpop.permute.xlu0 %2785
      %2789 = vset.pattern.permute.xlu0 0
      %2790 = vperm.xlu0 %2789, %v2652
      %v2791 = vpop.permute.xlu0 %2790
      %2794 = vset.pattern.permute.xlu0 0
      %2795 = vperm.xlu0 %2794, %v2653
      %v2796 = vpop.permute.xlu0 %2795
      %2799 = vset.pattern.permute.xlu0 0
      %2800 = vperm.xlu0 %2799, %v2654
      %v2801 = vpop.permute.xlu0 %2800
      %2804 = vset.pattern.permute.xlu0 0
      %2805 = vperm.xlu0 %2804, %v2655
      %v2806 = vpop.permute.xlu0 %2805
      %2809 = vset.pattern.permute.xlu0 0
      %2810 = vperm.xlu0 %2809, %v2656
      %v2811 = vpop.permute.xlu0 %2810
      %2814 = vset.pattern.permute.xlu0 0
      %2815 = vperm.xlu0 %2814, %v2657
      %v2816 = vpop.permute.xlu0 %2815
      %v2818 = vlaneseq
      %v2819 = vshrl.u32 %v2818, 7
      %v2820 = vsub.s32 5, %v2819
      %v2821 = vrot.slane %v1981, %v2820
      %v2822 = vmul.f32 %v2661, %v2821
      %v2823 = vmul.f32 %v2666, %v2821
      %v2824 = vmul.f32 %v2671, %v2821
      %v2825 = vmul.f32 %v2676, %v2821
      %v2826 = vmul.f32 %v2681, %v2821
      %v2827 = vmul.f32 %v2686, %v2821
      %v2828 = vmul.f32 %v2691, %v2821
      %v2829 = vmul.f32 %v2696, %v2821
      %v2830 = vmul.f32 %v2701, %v2821
      %v2831 = vmul.f32 %v2706, %v2821
      %v2832 = vmul.f32 %v2711, %v2821
      %v2833 = vmul.f32 %v2716, %v2821
      %v2834 = vmul.f32 %v2721, %v2821
      %v2835 = vmul.f32 %v2726, %v2821
      %v2836 = vmul.f32 %v2731, %v2821
      %v2837 = vmul.f32 %v2736, %v2821
      %v2838 = vmul.f32 %v2741, %v2821
      %v2839 = vmul.f32 %v2746, %v2821
      %v2840 = vmul.f32 %v2751, %v2821
      %v2841 = vmul.f32 %v2756, %v2821
      %v2842 = vmul.f32 %v2761, %v2821
      %v2843 = vmul.f32 %v2766, %v2821
      %v2844 = vmul.f32 %v2771, %v2821
      %v2845 = vmul.f32 %v2776, %v2821
      %v2846 = vmul.f32 %v2781, %v2821
      %v2847 = vmul.f32 %v2786, %v2821
      %v2848 = vmul.f32 %v2791, %v2821
      %v2849 = vmul.f32 %v2796, %v2821
      %v2850 = vmul.f32 %v2801, %v2821
      %v2851 = vmul.f32 %v2806, %v2821
      %v2852 = vmul.f32 %v2811, %v2821
      %v2853 = vmul.f32 %v2816, %v2821
      %v2854 = vadd.f32 %v2178, %v2822
      %v2855 = vadd.f32 %v2179, %v2823
      %v2856 = vadd.f32 %v2180, %v2824
      %v2857 = vadd.f32 %v2181, %v2825
      %v2858 = vadd.f32 %v2182, %v2826
      %v2859 = vadd.f32 %v2183, %v2827
      %v2860 = vadd.f32 %v2184, %v2828
      %v2861 = vadd.f32 %v2185, %v2829
      %v2862 = vadd.f32 %v2186, %v2830
      %v2863 = vadd.f32 %v2187, %v2831
      %v2864 = vadd.f32 %v2188, %v2832
      %v2865 = vadd.f32 %v2189, %v2833
      %v2866 = vadd.f32 %v2190, %v2834
      %v2867 = vadd.f32 %v2191, %v2835
      %v2868 = vadd.f32 %v2192, %v2836
      %v2869 = vadd.f32 %v2193, %v2837
      %v2870 = vadd.f32 %v2194, %v2838
      %v2871 = vadd.f32 %v2195, %v2839
      %v2872 = vadd.f32 %v2196, %v2840
      %v2873 = vadd.f32 %v2197, %v2841
      %v2874 = vadd.f32 %v2198, %v2842
      %v2875 = vadd.f32 %v2199, %v2843
      %v2876 = vadd.f32 %v2200, %v2844
      %v2877 = vadd.f32 %v2201, %v2845
      %v2878 = vadd.f32 %v2202, %v2846
      %v2879 = vadd.f32 %v2203, %v2847
      %v2880 = vadd.f32 %v2204, %v2848
      %v2881 = vadd.f32 %v2205, %v2849
      %v2882 = vadd.f32 %v2206, %v2850
      %v2883 = vadd.f32 %v2207, %v2851
      %v2884 = vadd.f32 %v2208, %v2852
      %v2885 = vadd.f32 %v2209, %v2853
      %v2886 = vunpack.c.l.bf16 %v360
      %v2887 = vunpack.c.l.bf16 %v361
      %v2888 = vld [vmem:[%s4] sm:$0x8]
      %v2889 = vunpack.c.l.bf16 %v2888
      %2891 = vset.pattern.permute.xlu0 0
      %2892 = vperm.xlu0 %2891, %v2886
      %v2893 = vpop.permute.xlu0 %2892
      %2896 = vset.pattern.permute.xlu0 0
      %2897 = vperm.xlu0 %2896, %v2887
      %v2898 = vpop.permute.xlu0 %2897
      %v2900 = vlaneseq
      %v2901 = vshrl.u32 %v2900, 7
      %v2902 = vsub.s32 6, %v2901
      %v2903 = vrot.slane %v2889, %v2902
      %v2904 = vmul.f32 %v532, %v2903
      %v2905 = vmul.f32 %v537, %v2903
      %v2906 = vmul.f32 %v542, %v2903
      %v2907 = vmul.f32 %v547, %v2903
      %v2908 = vmul.f32 %v552, %v2903
      %v2909 = vmul.f32 %v557, %v2903
      %v2910 = vmul.f32 %v562, %v2903
      %v2911 = vmul.f32 %v567, %v2903
      %v2912 = vmul.f32 %v572, %v2903
      %v2913 = vmul.f32 %v577, %v2903
      %v2914 = vmul.f32 %v582, %v2903
      %v2915 = vmul.f32 %v587, %v2903
      %v2916 = vmul.f32 %v592, %v2903
      %v2917 = vmul.f32 %v597, %v2903
      %v2918 = vmul.f32 %v602, %v2903
      %v2919 = vmul.f32 %v607, %v2903
      %v2920 = vmul.f32 %v612, %v2903
      %v2921 = vmul.f32 %v617, %v2903
      %v2922 = vmul.f32 %v622, %v2903
      %v2923 = vmul.f32 %v627, %v2903
      %v2924 = vmul.f32 %v632, %v2903
      %v2925 = vmul.f32 %v637, %v2903
      %v2926 = vmul.f32 %v642, %v2903
      %v2927 = vmul.f32 %v647, %v2903
      %v2928 = vmul.f32 %v652, %v2903
      %v2929 = vmul.f32 %v657, %v2903
      %v2930 = vmul.f32 %v662, %v2903
      %v2931 = vmul.f32 %v667, %v2903
      %v2932 = vmul.f32 %v672, %v2903
      %v2933 = vmul.f32 %v677, %v2903
      %v2934 = vmul.f32 %v2893, %v2903
      %v2935 = vmul.f32 %v2898, %v2903
      %v2936 = vadd.f32 %v2854, %v2904
      %v2937 = vadd.f32 %v2855, %v2905
      %v2938 = vadd.f32 %v2856, %v2906
      %v2939 = vadd.f32 %v2857, %v2907
      %v2940 = vadd.f32 %v2858, %v2908
      %v2941 = vadd.f32 %v2859, %v2909
      %v2942 = vadd.f32 %v2860, %v2910
      %v2943 = vadd.f32 %v2861, %v2911
      %v2944 = vadd.f32 %v2862, %v2912
      %v2945 = vadd.f32 %v2863, %v2913
      %v2946 = vadd.f32 %v2864, %v2914
      %v2947 = vadd.f32 %v2865, %v2915
      %v2948 = vadd.f32 %v2866, %v2916
      %v2949 = vadd.f32 %v2867, %v2917
      %v2950 = vadd.f32 %v2868, %v2918
      %v2951 = vadd.f32 %v2869, %v2919
      %v2952 = vadd.f32 %v2870, %v2920
      %v2953 = vadd.f32 %v2871, %v2921
      %v2954 = vadd.f32 %v2872, %v2922
      %v2955 = vadd.f32 %v2873, %v2923
      %v2956 = vadd.f32 %v2874, %v2924
      %v2957 = vadd.f32 %v2875, %v2925
      %v2958 = vadd.f32 %v2876, %v2926
      %v2959 = vadd.f32 %v2877, %v2927
      %v2960 = vadd.f32 %v2878, %v2928
      %v2961 = vadd.f32 %v2879, %v2929
      %v2962 = vadd.f32 %v2880, %v2930
      %v2963 = vadd.f32 %v2881, %v2931
      %v2964 = vadd.f32 %v2882, %v2932
      %v2965 = vadd.f32 %v2883, %v2933
      %v2966 = vadd.f32 %v2884, %v2934
      %v2967 = vadd.f32 %v2885, %v2935
      %v2968 = vunpack.c.l.bf16 %v395
      %v2969 = vunpack.c.l.bf16 %v396
      %2971 = vset.pattern.permute.xlu0 0
      %2972 = vperm.xlu0 %2971, %v2968
      %v2973 = vpop.permute.xlu0 %2972
      %2976 = vset.pattern.permute.xlu0 0
      %2977 = vperm.xlu0 %2976, %v2969
      %v2978 = vpop.permute.xlu0 %2977
      %v2980 = vlaneseq
      %v2981 = vshrl.u32 %v2980, 7
      %v2982 = vsub.s32 7, %v2981
      %v2983 = vrot.slane %v2889, %v2982
      %v2984 = vmul.f32 %v792, %v2983
      %v2985 = vmul.f32 %v797, %v2983
      %v2986 = vmul.f32 %v802, %v2983
      %v2987 = vmul.f32 %v807, %v2983
      %v2988 = vmul.f32 %v812, %v2983
      %v2989 = vmul.f32 %v817, %v2983
      %v2990 = vmul.f32 %v822, %v2983
      %v2991 = vmul.f32 %v827, %v2983
      %v2992 = vmul.f32 %v832, %v2983
      %v2993 = vmul.f32 %v837, %v2983
      %v2994 = vmul.f32 %v842, %v2983
      %v2995 = vmul.f32 %v847, %v2983
      %v2996 = vmul.f32 %v852, %v2983
      %v2997 = vmul.f32 %v857, %v2983
      %v2998 = vmul.f32 %v862, %v2983
      %v2999 = vmul.f32 %v867, %v2983
      %v3000 = vmul.f32 %v872, %v2983
      %v3001 = vmul.f32 %v877, %v2983
      %v3002 = vmul.f32 %v882, %v2983
      %v3003 = vmul.f32 %v887, %v2983
      %v3004 = vmul.f32 %v892, %v2983
      %v3005 = vmul.f32 %v897, %v2983
      %v3006 = vmul.f32 %v902, %v2983
      %v3007 = vmul.f32 %v907, %v2983
      %v3008 = vmul.f32 %v912, %v2983
      %v3009 = vmul.f32 %v917, %v2983
      %v3010 = vmul.f32 %v922, %v2983
      %v3011 = vmul.f32 %v927, %v2983
      %v3012 = vmul.f32 %v932, %v2983
      %v3013 = vmul.f32 %v937, %v2983
      %v3014 = vmul.f32 %v2973, %v2983
      %v3015 = vmul.f32 %v2978, %v2983
      %v3016 = vadd.f32 %v2936, %v2984
      %v3017 = vadd.f32 %v2937, %v2985
      %v3018 = vadd.f32 %v2938, %v2986
      %v3019 = vadd.f32 %v2939, %v2987
      %v3020 = vadd.f32 %v2940, %v2988
      %v3021 = vadd.f32 %v2941, %v2989
      %v3022 = vadd.f32 %v2942, %v2990
      %v3023 = vadd.f32 %v2943, %v2991
      %v3024 = vadd.f32 %v2944, %v2992
      %v3025 = vadd.f32 %v2945, %v2993
      %v3026 = vadd.f32 %v2946, %v2994
      %v3027 = vadd.f32 %v2947, %v2995
      %v3028 = vadd.f32 %v2948, %v2996
      %v3029 = vadd.f32 %v2949, %v2997
      %v3030 = vadd.f32 %v2950, %v2998
      %v3031 = vadd.f32 %v2951, %v2999
      %v3032 = vadd.f32 %v2952, %v3000
      %v3033 = vadd.f32 %v2953, %v3001
      %v3034 = vadd.f32 %v2954, %v3002
      %v3035 = vadd.f32 %v2955, %v3003
      %v3036 = vadd.f32 %v2956, %v3004
      %v3037 = vadd.f32 %v2957, %v3005
      %v3038 = vadd.f32 %v2958, %v3006
      %v3039 = vadd.f32 %v2959, %v3007
      %v3040 = vadd.f32 %v2960, %v3008
      %v3041 = vadd.f32 %v2961, %v3009
      %v3042 = vadd.f32 %v2962, %v3010
      %v3043 = vadd.f32 %v2963, %v3011
      %v3044 = vadd.f32 %v2964, %v3012
      %v3045 = vadd.f32 %v2965, %v3013
      %v3046 = vadd.f32 %v2966, %v3014
      %v3047 = vadd.f32 %v2967, %v3015
      %v3049 = vshrl.u32 %v360, 16
      %v3051 = vrot.slane %v3049, 4
      %v3052 = vshll.u32 %v360, 16
      %v3054 = vrot.slane %v3052, 5
      %v3055 = vor.u32 %v3051, %v3054
      %v3056 = vrot.slane %v3055, 4
      %v3058 = vshll.u32 %v361, 16
      %v3060 = vrot.slane %v3058, 5
      %v3061 = vsel %vm1009, %v3056, %v3060
      %v3062 = vshrl.u32 %v361, 16
      %v3064 = vrot.slane %v3062, 4
      %v3065 = vor.u32 %v3064, %v3060
      %v3066 = vrot.slane %v3065, 4
      %v3068 = vshll.u32 %v362, 16
      %v3070 = vrot.slane %v3068, 5
      %v3071 = vsel %vm1009, %v3066, %v3070
      %v3074 = vunpack.c.l.bf16 %v3061
      %v3075 = vunpack.c.l.bf16 %v3071
      %v3076 = vld [vmem:[%s4 + $0x4] sm:$0x1]
      %v3077 = vunpack.c.l.bf16 %v3076
      %3079 = vset.pattern.permute.xlu0 0
      %3080 = vperm.xlu0 %3079, %v3074
      %v3081 = vpop.permute.xlu0 %3080
      %3084 = vset.pattern.permute.xlu0 0
      %3085 = vperm.xlu0 %3084, %v3075
      %v3086 = vpop.permute.xlu0 %3085
      %v3088 = vlaneseq
      %v3089 = vshrl.u32 %v3088, 7
      %v3090 = vsub.s32 0, %v3089
      %v3091 = vrot.slane %v3077, %v3090
      %v3092 = vmul.f32 %v1473, %v3091
      %v3093 = vmul.f32 %v1478, %v3091
      %v3094 = vmul.f32 %v1483, %v3091
      %v3095 = vmul.f32 %v1488, %v3091
      %v3096 = vmul.f32 %v1493, %v3091
      %v3097 = vmul.f32 %v1498, %v3091
      %v3098 = vmul.f32 %v1503, %v3091
      %v3099 = vmul.f32 %v1508, %v3091
      %v3100 = vmul.f32 %v1513, %v3091
      %v3101 = vmul.f32 %v1518, %v3091
      %v3102 = vmul.f32 %v1523, %v3091
      %v3103 = vmul.f32 %v1528, %v3091
      %v3104 = vmul.f32 %v1533, %v3091
      %v3105 = vmul.f32 %v1538, %v3091
      %v3106 = vmul.f32 %v1543, %v3091
      %v3107 = vmul.f32 %v1548, %v3091
      %v3108 = vmul.f32 %v1553, %v3091
      %v3109 = vmul.f32 %v1558, %v3091
      %v3110 = vmul.f32 %v1563, %v3091
      %v3111 = vmul.f32 %v1568, %v3091
      %v3112 = vmul.f32 %v1573, %v3091
      %v3113 = vmul.f32 %v1578, %v3091
      %v3114 = vmul.f32 %v1583, %v3091
      %v3115 = vmul.f32 %v1588, %v3091
      %v3116 = vmul.f32 %v1593, %v3091
      %v3117 = vmul.f32 %v1598, %v3091
      %v3118 = vmul.f32 %v1603, %v3091
      %v3119 = vmul.f32 %v1608, %v3091
      %v3120 = vmul.f32 %v1613, %v3091
      %v3121 = vmul.f32 %v1618, %v3091
      %v3122 = vmul.f32 %v3081, %v3091
      %v3123 = vmul.f32 %v3086, %v3091
      %v3124 = vadd.f32 %v3016, %v3092
      %v3125 = vadd.f32 %v3017, %v3093
      %v3126 = vadd.f32 %v3018, %v3094
      %v3127 = vadd.f32 %v3019, %v3095
      %v3128 = vadd.f32 %v3020, %v3096
      %v3129 = vadd.f32 %v3021, %v3097
      %v3130 = vadd.f32 %v3022, %v3098
      %v3131 = vadd.f32 %v3023, %v3099
      %v3132 = vadd.f32 %v3024, %v3100
      %v3133 = vadd.f32 %v3025, %v3101
      %v3134 = vadd.f32 %v3026, %v3102
      %v3135 = vadd.f32 %v3027, %v3103
      %v3136 = vadd.f32 %v3028, %v3104
      %v3137 = vadd.f32 %v3029, %v3105
      %v3138 = vadd.f32 %v3030, %v3106
      %v3139 = vadd.f32 %v3031, %v3107
      %v3140 = vadd.f32 %v3032, %v3108
      %v3141 = vadd.f32 %v3033, %v3109
      %v3142 = vadd.f32 %v3034, %v3110
      %v3143 = vadd.f32 %v3035, %v3111
      %v3144 = vadd.f32 %v3036, %v3112
      %v3145 = vadd.f32 %v3037, %v3113
      %v3146 = vadd.f32 %v3038, %v3114
      %v3147 = vadd.f32 %v3039, %v3115
      %v3148 = vadd.f32 %v3040, %v3116
      %v3149 = vadd.f32 %v3041, %v3117
      %v3150 = vadd.f32 %v3042, %v3118
      %v3151 = vadd.f32 %v3043, %v3119
      %v3152 = vadd.f32 %v3044, %v3120
      %v3153 = vadd.f32 %v3045, %v3121
      %v3154 = vadd.f32 %v3046, %v3122
      %v3155 = vadd.f32 %v3047, %v3123
      %v3156 = vmax.f32 %v3124, 0.0
      %v3157 = vmax.f32 %v3125, 0.0
      %v3158 = vmax.f32 %v3126, 0.0
      %v3159 = vmax.f32 %v3127, 0.0
      %v3160 = vmax.f32 %v3128, 0.0
      %v3161 = vmax.f32 %v3129, 0.0
      %v3162 = vmax.f32 %v3130, 0.0
      %v3163 = vmax.f32 %v3131, 0.0
      %v3164 = vmax.f32 %v3132, 0.0
      %v3165 = vmax.f32 %v3133, 0.0
      %v3166 = vmax.f32 %v3134, 0.0
      %v3167 = vmax.f32 %v3135, 0.0
      %v3168 = vmax.f32 %v3136, 0.0
      %v3169 = vmax.f32 %v3137, 0.0
      %v3170 = vmax.f32 %v3138, 0.0
      %v3171 = vmax.f32 %v3139, 0.0
      %v3172 = vmax.f32 %v3140, 0.0
      %v3173 = vmax.f32 %v3141, 0.0
      %v3174 = vmax.f32 %v3142, 0.0
      %v3175 = vmax.f32 %v3143, 0.0
      %v3176 = vmax.f32 %v3144, 0.0
      %v3177 = vmax.f32 %v3145, 0.0
      %v3178 = vmax.f32 %v3146, 0.0
      %v3179 = vmax.f32 %v3147, 0.0
      %v3180 = vmax.f32 %v3148, 0.0
      %v3181 = vmax.f32 %v3149, 0.0
      %v3182 = vmax.f32 %v3150, 0.0
      %v3183 = vmax.f32 %v3151, 0.0
      %v3184 = vmax.f32 %v3152, 0.0
      %v3185 = vmax.f32 %v3153, 0.0
      %v3186 = vmax.f32 %v3154, 0.0
      %v3187 = vmax.f32 %v3155, 0.0
      %vm3188 = vcmask 64512
      %3189 = vst.msk [vmem:[%s311] sm:$0xff] %vm3188, %v3156
      %3190 = vst.msk [vmem:[%s311 + $0x8] sm:$0xff] %vm3188, %v3157
      %3191 = vst.msk [vmem:[%s311 + $0x10] sm:$0xff] %vm3188, %v3158
      %3192 = vst.msk [vmem:[%s311 + $0x18] sm:$0xff] %vm3188, %v3159
      %3193 = vst.msk [vmem:[%s311 + $0x20] sm:$0xff] %vm3188, %v3160
      %3194 = vst.msk [vmem:[%s311 + $0x28] sm:$0xff] %vm3188, %v3161
      %3195 = vst.msk [vmem:[%s311 + $0x30] sm:$0xff] %vm3188, %v3162
      %3196 = vst.msk [vmem:[%s311 + $0x38] sm:$0xff] %vm3188, %v3163
      %3197 = vst.msk [vmem:[%s311 + $0x40] sm:$0xff] %vm3188, %v3164
      %3198 = vst.msk [vmem:[%s311 + $0x48] sm:$0xff] %vm3188, %v3165
      %3199 = vst.msk [vmem:[%s311 + $0x50] sm:$0xff] %vm3188, %v3166
      %3200 = vst.msk [vmem:[%s311 + $0x58] sm:$0xff] %vm3188, %v3167
      %3201 = vst.msk [vmem:[%s311 + $0x60] sm:$0xff] %vm3188, %v3168
      %3202 = vst.msk [vmem:[%s311 + $0x68] sm:$0xff] %vm3188, %v3169
      %3203 = vst.msk [vmem:[%s311 + $0x70] sm:$0xff] %vm3188, %v3170
      %3204 = vst.msk [vmem:[%s311 + $0x78] sm:$0xff] %vm3188, %v3171
      %3205 = vst.msk [vmem:[%s311 + $0x80] sm:$0xff] %vm3188, %v3172
      %3206 = vst.msk [vmem:[%s311 + $0x88] sm:$0xff] %vm3188, %v3173
      %3207 = vst.msk [vmem:[%s311 + $0x90] sm:$0xff] %vm3188, %v3174
      %3208 = vst.msk [vmem:[%s311 + $0x98] sm:$0xff] %vm3188, %v3175
      %3209 = vst.msk [vmem:[%s311 + $0xa0] sm:$0xff] %vm3188, %v3176
      %3210 = vst.msk [vmem:[%s311 + $0xa8] sm:$0xff] %vm3188, %v3177
      %3211 = vst.msk [vmem:[%s311 + $0xb0] sm:$0xff] %vm3188, %v3178
      %3212 = vst.msk [vmem:[%s311 + $0xb8] sm:$0xff] %vm3188, %v3179
      %3213 = vst.msk [vmem:[%s311 + $0xc0] sm:$0xff] %vm3188, %v3180
      %3214 = vst.msk [vmem:[%s311 + $0xc8] sm:$0xff] %vm3188, %v3181
      %3215 = vst.msk [vmem:[%s311 + $0xd0] sm:$0xff] %vm3188, %v3182
      %3216 = vst.msk [vmem:[%s311 + $0xd8] sm:$0xff] %vm3188, %v3183
      %3217 = vst.msk [vmem:[%s311 + $0xe0] sm:$0xff] %vm3188, %v3184
      %3218 = vst.msk [vmem:[%s311 + $0xe8] sm:$0xff] %vm3188, %v3185
      %3219 = vst.msk [vmem:[%s311 + $0xf0] sm:$0xff] %vm3188, %v3186
      %3220 = vst.msk [vmem:[%s311 + $0xf8] sm:$0xff] %vm3188, %v3187
      %p3221 = scmp.lt.s32.totalorder %s17, 3
      %s3222 = scalar_select %p3221, %s17, 3
      %s3223 = smul.addr %s3222, 32
      %s3224 = smul.addr %s3223, 8
      %s3225 = scalar_lea.vmem %s6, %s3224
      // Predicated region
      $region45: #{tpu_custom_call.1} parent=43 // pred_check
        %p3226 = pneg %p181
      $region46: #{tpu_custom_call.1} parent=43 // pred_check_branch
        %3228 = sbr.rel (%p3226) target = $region48
      $region47: #{tpu_custom_call.1} parent=43 // pred_region
        _
      $region48: #{tpu_custom_call.1} parent=43 // pred_fallthru
        _
    $region44: #{tpu_custom_call.1} parent=5 // pred_fallthru
      _
    %p3229 = scmp.le.s32.totalorder 2, %s12
    // Predicated region
    $region49: #{tpu_custom_call.1} parent=5 // pred_check
      %p3230 = pneg %p3229
    $region50: #{tpu_custom_call.1} parent=5 // pred_check_branch
      %3232 = sbr.rel (%p3230) target = $region52
    $region51: #{tpu_custom_call.1} parent=5 // pred_region
      %s3233 = ssub.s32 %s12, 2
      // Predicated region
      $region53: #{tpu_custom_call.1} parent=51 // pred_check
        %p3234 = pneg %p187
      $region54: #{tpu_custom_call.1} parent=51 // pred_check_branch
        %3236 = sbr.rel (%p3234) target = $region56
      $region55: #{tpu_custom_call.1} parent=51 // pred_region
        %p3237 = scmp.lt.s32.totalorder %s18, 3
        %s3238 = scalar_select %p3237, %s18, 3
        %s3239 = smul.addr %s3238, 32
        %s3240 = smul.addr %s3239, 8
        %s3241 = scalar_lea.vmem %s6, %s3240
      $region56: #{tpu_custom_call.1} parent=51 // pred_fallthru
        _
    $region52: #{tpu_custom_call.1} parent=5 // pred_fallthru
      _
  $region6: #{tpu_custom_call.1} parent=0 // loop_footer
    %s16 = sadd.s32 1, %s12
  $region7: #{tpu_custom_call.1} parent=0 // loop_footer_branch
    %11 = sbr.rel target = $region3
  $region8: #{tpu_custom_call.1} parent=0 // loop_exit
    _

</llo_original>
